<compile_context>
chip_gen: v7x
topology: tpu7x:2x2x1
jax: 0.10.0
libtpu: 0.0.40
codegen_flags: <defaults>
</compile_context>

<pallas_src>
import functools

import jax
import jax.numpy as jnp
from jax.experimental import pallas as pl
from jax.experimental.pallas import tpu as pltpu


# ---------------------------------------------------------------------------
# Phase 1: transposed conv as ONE matmul per image + per-image BN partial stats
# ---------------------------------------------------------------------------
def _convt_stats_kernel(x_ref, w_ref, y_ref, sum_ref, ssq_ref, lhs_ref,
                        *, kH, kW, Cin, Ho, Wo):
    # x_ref  : (1, Hp*Cin, Wp)   padded input; row index = h*Cin + ci
    # w_ref  : (Cout, K)         K = kW*kH*Cin, column order (kj, ki, ci)
    # y_ref  : (1, Cout, Ho*Wo)  channel-major pre-BN conv output
    # sum_ref/ssq_ref : (1, Cout, 1) per-image partial BN statistics
    # lhs_ref: (K, Ho*Wo)        VMEM im2col scratch (fully overwritten each step)
    khc = kH * Cin
    # Build the (K, Ho*Wo) patch matrix with static rectangular copies:
    #   lhs[kj*khc + ki*Cin + ci, h*Wo + wo] = x_pad[(h+ki)*Cin + ci, wo + kj]
    for h in range(Ho):
        c0 = h * Wo
        r0 = h * Cin
        for kj in range(kW):
            lhs_ref[kj * khc:(kj + 1) * khc, c0:c0 + Wo] = \
                x_ref[0, r0:r0 + khc, kj:kj + Wo]

    # Single MXU matmul: (Cout, K) @ (K, Ho*Wo) -> channel-major output.
    acc = jnp.dot(w_ref[...], lhs_ref[...],
                  preferred_element_type=jnp.float32)        # (Cout, Ho*Wo)
    y_ref[0] = acc
    # Per-image partial sums for train-mode BatchNorm (reduced in the wrapper).
    sum_ref[0] = jnp.sum(acc, axis=1, keepdims=True)
    ssq_ref[0] = jnp.sum(acc * acc, axis=1, keepdims=True)


# ---------------------------------------------------------------------------
# Phase 2: folded BN affine + GELU(approximate='tanh'), Horner form
# ---------------------------------------------------------------------------
_GELU_C0 = 0.7978845608028654          # sqrt(2/pi)
_GELU_C1 = _GELU_C0 * 0.044715


def _bn_gelu_kernel(y_ref, scale_ref, shift_ref, o_ref):
    z = y_ref[...] * scale_ref[...] + shift_ref[...]
    inner = z * (_GELU_C0 + _GELU_C1 * (z * z))   # c0*z + c0*0.044715*z^3
    o_ref[...] = (0.5 * z) * (1.0 + jnp.tanh(inner))


# ---------------------------------------------------------------------------
# Wrapper
# ---------------------------------------------------------------------------
def conv_transpose_bn_act(x_nchw, weight, gamma, beta, kernel_size=3, eps=1e-5):
    """x_nchw: (N, Cin, H, W); weight: (Cin, Cout, kH, kW) (PyTorch layout)."""
    N, Cin, H, W = x_nchw.shape
    Cin_w, Cout, kH, kW = weight.shape
    assert Cin_w == Cin and kH == kernel_size and kW == kernel_size
    Ho, Wo = H + kH - 1, W + kW - 1                 # stride=1, pad=0, out_pad=0
    Hp, Wp = H + 2 * (kH - 1), W + 2 * (kW - 1)
    K = kW * kH * Cin
    L = Ho * Wo

    # (N,Cin,H,W) -> (N,H,Cin,W) -> zero-pad H,W -> (N, Hp*Cin, Wp).
    # Transposed conv == conv of the padded input with the flipped kernel.
    x_t = jnp.transpose(x_nchw.astype(jnp.float32), (0, 2, 1, 3))
    x_p = jnp.pad(x_t, ((0, 0), (kH - 1, kH - 1), (0, 0), (kW - 1, kW - 1)))
    x2 = x_p.reshape(N, Hp * Cin, Wp)

    # Flipped weight reshaped to (Cout, K) with K ordered (kj, ki, ci).
    wf = weight.astype(jnp.float32)[:, :, ::-1, ::-1]        # (Cin,Cout,kH,kW)
    wmat = jnp.transpose(wf, (1, 3, 2, 0)).reshape(Cout, K)

    kernel1 = functools.partial(_convt_stats_kernel,
                                kH=kH, kW=kW, Cin=Cin, Ho=Ho, Wo=Wo)
    y, psum, pssq = pl.pallas_call(
        kernel1,
        out_shape=(
            jax.ShapeDtypeStruct((N, Cout, L), jnp.float32),   # pre-BN conv
            jax.ShapeDtypeStruct((N, Cout, 1), jnp.float32),   # per-image sum
            jax.ShapeDtypeStruct((N, Cout, 1), jnp.float32),   # per-image sum sq
        ),
        grid=(N,),
        in_specs=[
            pl.BlockSpec((1, Hp * Cin, Wp), lambda n: (n, 0, 0)),
            pl.BlockSpec((Cout, K), lambda n: (0, 0)),          # resident weight
        ],
        out_specs=(
            pl.BlockSpec((1, Cout, L), lambda n: (n, 0, 0)),
            pl.BlockSpec((1, Cout, 1), lambda n: (n, 0, 0)),
            pl.BlockSpec((1, Cout, 1), lambda n: (n, 0, 0)),
        ),
        scratch_shapes=[pltpu.VMEM((K, L), jnp.float32)],
        compiler_params=pltpu.CompilerParams(
            dimension_semantics=("parallel",)),                 # no cross-step state
        cost_estimate=pl.CostEstimate(
            flops=2 * N * Cout * K * L,
            transcendentals=0,
            bytes_accessed=4 * (N * Hp * Cin * Wp + Cout * K + N * Cout * (L + 2))),
    )(x2, wmat)

    # Fold train-mode BN batch statistics (biased variance) into per-channel
    # scale/shift.  O(Cout) scalar math -> plain XLA.
    m = jnp.float32(N * L)
    mean = jnp.sum(psum, axis=0) / m                            # (Cout, 1)
    var = jnp.maximum(jnp.sum(pssq, axis=0) / m - mean * mean, 0.0)
    inv = jax.lax.rsqrt(var + eps)
    scale = gamma.astype(jnp.float32).reshape(Cout, 1) * inv
    shift = beta.astype(jnp.float32).reshape(Cout, 1) - mean * scale

    # Phase 2 on the channel-major intermediate: rows = (n, cout), lanes = Ho*Wo.
    R = N * Cout
    y2 = y.reshape(R, L)                   # free reshape (contiguous)
    scale2 = jnp.tile(scale, (N, 1))       # (R, 1)
    shift2 = jnp.tile(shift, (N, 1))
    TR = R if R <= 1024 else 1024
    out2 = pl.pallas_call(
        _bn_gelu_kernel,
        out_shape=jax.ShapeDtypeStruct((R, L), jnp.float32),
        grid=(pl.cdiv(R, TR),),
        in_specs=[
            pl.BlockSpec((TR, L), lambda i: (i, 0)),
            pl.BlockSpec((TR, 1), lambda i: (i, 0)),
            pl.BlockSpec((TR, 1), lambda i: (i, 0)),
        ],
        out_specs=pl.BlockSpec((TR, L), lambda i: (i, 0)),
        compiler_params=pltpu.CompilerParams(
            dimension_semantics=("parallel",)),
        cost_estimate=pl.CostEstimate(
            flops=10 * R * L,
            transcendentals=R * L,
            bytes_accessed=4 * (2 * R * L + 2 * R)),
    )(y2, scale2, shift2)

    # Channel-major layout makes NCHW a free reshape (no tail transpose pass).
    return out2.reshape(N, Cout, Ho, Wo)


# ---------------------------------------------------------------------------
# Pure-JAX reference mirroring the PyTorch forward (train-mode BN)
# ---------------------------------------------------------------------------
def _reference(x, weight, gamma, beta):
    N, Cin, H, W = x.shape
    _, Cout, kH, kW = weight.shape
    Ho, Wo = H + kH - 1, W + kW - 1
    out = jnp.zeros((N, Cout, Ho, Wo), jnp.float32)
    for ki in range(kH):
        for kj in range(kW):
            out = out.at[:, :, ki:ki + H, kj:kj + W].add(
                jnp.einsum('nchw,co->nohw', x, weight[:, :, ki, kj]))
    mean = out.mean(axis=(0, 2, 3), keepdims=True)
    var = ((out - mean) ** 2).mean(axis=(0, 2, 3), keepdims=True)
    yn = (out - mean) / jnp.sqrt(var + 1e-5)
    yn = yn * gamma.reshape(1, Cout, 1, 1) + beta.reshape(1, Cout, 1, 1)
    c0 = 0.7978845608028654
    return 0.5 * yn * (1.0 + jnp.tanh(c0 * (yn + 0.044715 * yn ** 3)))


if __name__ == "__main__":
    key = jax.random.PRNGKey(0)
    k1, k2, k3, k4 = jax.random.split(key, 4)

    N, Cin, Cout, H, W, ksize = 2, 4, 8, 16, 16, 3
    x = jax.random.normal(k1, (N, Cin, H, W), jnp.float32)
    # ConvTranspose2d weight layout is (Cin, Cout, kH, kW); module uses bias=False.
    weight = jax.random.normal(k2, (Cin, Cout, ksize, ksize), jnp.float32) * 0.1
    gamma = 1.0 + 0.1 * jax.random.normal(k3, (Cout,), jnp.float32)
    beta = 0.1 * jax.random.normal(k4, (Cout,), jnp.float32)

    out = conv_transpose_bn_act(x, weight, gamma, beta, kernel_size=ksize)
    out = jax.block_until_ready(out)

    ref = _reference(x, weight, gamma, beta)
    assert out.shape == (N, Cout, H + ksize - 1, W + ksize - 1)
    assert jnp.allclose(out, ref, rtol=1e-4, atol=1e-4), "mismatch vs reference"

    print("KERNEL_OK")
</pallas_src>

<mosaic_0001>
module attributes {stable_mosaic.version = 11 : i64} {
  func.func @_convt_stats_kernel(%arg0: i32, %arg1: memref<1x80x20xf32, #tpu.memory_space<vmem>>, %arg2: memref<8x36xf32, #tpu.memory_space<vmem>>, %arg3: memref<1x8x324xf32, #tpu.memory_space<vmem>>, %arg4: memref<1x8x1xf32, #tpu.memory_space<vmem>>, %arg5: memref<1x8x1xf32, #tpu.memory_space<vmem>>, %arg6: memref<36x324xf32, #tpu.memory_space<vmem>>) attributes {dimension_semantics = [#tpu.dimension_semantics<parallel>], iteration_bounds = array<i64: 2>, scalar_prefetch = 0 : i64, scratch_operands = 1 : i64, tpu.core_type = #tpu.core_type<tc>, window_params = [{transform_indices = @transform_0, window_bounds = array<i64: 1, 80, 20>}, {pipeline_mode = #tpu.pipeline_mode<synchronous>, transform_indices = @transform_1, window_bounds = array<i64: 8, 36>}, {transform_indices = @transform_2, window_bounds = array<i64: 1, 8, 324>}, {transform_indices = @transform_3, window_bounds = array<i64: 1, 8, 1>}, {transform_indices = @transform_4, window_bounds = array<i64: 1, 8, 1>}]} {
    %c0 = arith.constant 0 : index
    %c0_0 = arith.constant 0 : index
    %c0_1 = arith.constant 0 : index
    %0 = vector.load %arg1[%c0, %c0_0, %c0_1] : memref<1x80x20xf32, #tpu.memory_space<vmem>>, vector<1x12x18xf32>
    %1 = vector.shape_cast %0 : vector<1x12x18xf32> to vector<12x18xf32>
    %c0_2 = arith.constant 0 : index
    %c0_3 = arith.constant 0 : index
    %2 = vector.load %arg6[%c0_2, %c0_3] : memref<36x324xf32, #tpu.memory_space<vmem>>, vector<12x18xf32>
    tpu.vector_store %arg6[%c0_2, %c0_3], %1 {strides = array<i32>} : memref<36x324xf32, #tpu.memory_space<vmem>>, vector<12x18xf32>,
    %c0_4 = arith.constant 0 : index
    %c0_5 = arith.constant 0 : index
    %c1 = arith.constant 1 : index
    %3 = vector.load %arg1[%c0_4, %c0_5, %c1] : memref<1x80x20xf32, #tpu.memory_space<vmem>>, vector<1x12x18xf32>
    %4 = vector.shape_cast %3 : vector<1x12x18xf32> to vector<12x18xf32>
    %c12 = arith.constant 12 : index
    %c0_6 = arith.constant 0 : index
    %5 = vector.load %arg6[%c12, %c0_6] : memref<36x324xf32, #tpu.memory_space<vmem>>, vector<12x18xf32>
    tpu.vector_store %arg6[%c12, %c0_6], %4 {strides = array<i32>} : memref<36x324xf32, #tpu.memory_space<vmem>>, vector<12x18xf32>,
    %c0_7 = arith.constant 0 : index
    %c0_8 = arith.constant 0 : index
    %c2 = arith.constant 2 : index
    %6 = vector.load %arg1[%c0_7, %c0_8, %c2] : memref<1x80x20xf32, #tpu.memory_space<vmem>>, vector<1x12x18xf32>
    %7 = vector.shape_cast %6 : vector<1x12x18xf32> to vector<12x18xf32>
    %c24 = arith.constant 24 : index
    %c0_9 = arith.constant 0 : index
    %8 = vector.load %arg6[%c24, %c0_9] : memref<36x324xf32, #tpu.memory_space<vmem>>, vector<12x18xf32>
    tpu.vector_store %arg6[%c24, %c0_9], %7 {strides = array<i32>} : memref<36x324xf32, #tpu.memory_space<vmem>>, vector<12x18xf32>,
    %c0_10 = arith.constant 0 : index
    %c4 = arith.constant 4 : index
    %c0_11 = arith.constant 0 : index
    %9 = vector.load %arg1[%c0_10, %c4, %c0_11] : memref<1x80x20xf32, #tpu.memory_space<vmem>>, vector<1x12x18xf32>
    %10 = vector.shape_cast %9 : vector<1x12x18xf32> to vector<12x18xf32>
    %c0_12 = arith.constant 0 : index
    %c18 = arith.constant 18 : index
    %11 = vector.load %arg6[%c0_12, %c18] : memref<36x324xf32, #tpu.memory_space<vmem>>, vector<12x18xf32>
    tpu.vector_store %arg6[%c0_12, %c18], %10 {strides = array<i32>} : memref<36x324xf32, #tpu.memory_space<vmem>>, vector<12x18xf32>,
    %c0_13 = arith.constant 0 : index
    %c4_14 = arith.constant 4 : index
    %c1_15 = arith.constant 1 : index
    %12 = vector.load %arg1[%c0_13, %c4_14, %c1_15] : memref<1x80x20xf32, #tpu.memory_space<vmem>>, vector<1x12x18xf32>
    %13 = vector.shape_cast %12 : vector<1x12x18xf32> to vector<12x18xf32>
    %c12_16 = arith.constant 12 : index
    %c18_17 = arith.constant 18 : index
    %14 = vector.load %arg6[%c12_16, %c18_17] : memref<36x324xf32, #tpu.memory_space<vmem>>, vector<12x18xf32>
    tpu.vector_store %arg6[%c12_16, %c18_17], %13 {strides = array<i32>} : memref<36x324xf32, #tpu.memory_space<vmem>>, vector<12x18xf32>,
    %c0_18 = arith.constant 0 : index
    %c4_19 = arith.constant 4 : index
    %c2_20 = arith.constant 2 : index
    %15 = vector.load %arg1[%c0_18, %c4_19, %c2_20] : memref<1x80x20xf32, #tpu.memory_space<vmem>>, vector<1x12x18xf32>
    %16 = vector.shape_cast %15 : vector<1x12x18xf32> to vector<12x18xf32>
    %c24_21 = arith.constant 24 : index
    %c18_22 = arith.constant 18 : index
    %17 = vector.load %arg6[%c24_21, %c18_22] : memref<36x324xf32, #tpu.memory_space<vmem>>, vector<12x18xf32>
    tpu.vector_store %arg6[%c24_21, %c18_22], %16 {strides = array<i32>} : memref<36x324xf32, #tpu.memory_space<vmem>>, vector<12x18xf32>,
    %c0_23 = arith.constant 0 : index
    %c8 = arith.constant 8 : index
    %c0_24 = arith.constant 0 : index
    %18 = vector.load %arg1[%c0_23, %c8, %c0_24] : memref<1x80x20xf32, #tpu.memory_space<vmem>>, vector<1x12x18xf32>
    %19 = vector.shape_cast %18 : vector<1x12x18xf32> to vector<12x18xf32>
    %c0_25 = arith.constant 0 : index
    %c36 = arith.constant 36 : index
    %20 = vector.load %arg6[%c0_25, %c36] : memref<36x324xf32, #tpu.memory_space<vmem>>, vector<12x18xf32>
    tpu.vector_store %arg6[%c0_25, %c36], %19 {strides = array<i32>} : memref<36x324xf32, #tpu.memory_space<vmem>>, vector<12x18xf32>,
    %c0_26 = arith.constant 0 : index
    %c8_27 = arith.constant 8 : index
    %c1_28 = arith.constant 1 : index
    %21 = vector.load %arg1[%c0_26, %c8_27, %c1_28] : memref<1x80x20xf32, #tpu.memory_space<vmem>>, vector<1x12x18xf32>
    %22 = vector.shape_cast %21 : vector<1x12x18xf32> to vector<12x18xf32>
    %c12_29 = arith.constant 12 : index
    %c36_30 = arith.constant 36 : index
    %23 = vector.load %arg6[%c12_29, %c36_30] : memref<36x324xf32, #tpu.memory_space<vmem>>, vector<12x18xf32>
    tpu.vector_store %arg6[%c12_29, %c36_30], %22 {strides = array<i32>} : memref<36x324xf32, #tpu.memory_space<vmem>>, vector<12x18xf32>,
    %c0_31 = arith.constant 0 : index
    %c8_32 = arith.constant 8 : index
    %c2_33 = arith.constant 2 : index
    %24 = vector.load %arg1[%c0_31, %c8_32, %c2_33] : memref<1x80x20xf32, #tpu.memory_space<vmem>>, vector<1x12x18xf32>
    %25 = vector.shape_cast %24 : vector<1x12x18xf32> to vector<12x18xf32>
    %c24_34 = arith.constant 24 : index
    %c36_35 = arith.constant 36 : index
    %26 = vector.load %arg6[%c24_34, %c36_35] : memref<36x324xf32, #tpu.memory_space<vmem>>, vector<12x18xf32>
    tpu.vector_store %arg6[%c24_34, %c36_35], %25 {strides = array<i32>} : memref<36x324xf32, #tpu.memory_space<vmem>>, vector<12x18xf32>,
    %c0_36 = arith.constant 0 : index
    %c12_37 = arith.constant 12 : index
    %c0_38 = arith.constant 0 : index
    %27 = vector.load %arg1[%c0_36, %c12_37, %c0_38] : memref<1x80x20xf32, #tpu.memory_space<vmem>>, vector<1x12x18xf32>
    %28 = vector.shape_cast %27 : vector<1x12x18xf32> to vector<12x18xf32>
    %c0_39 = arith.constant 0 : index
    %c54 = arith.constant 54 : index
    %29 = vector.load %arg6[%c0_39, %c54] : memref<36x324xf32, #tpu.memory_space<vmem>>, vector<12x18xf32>
    tpu.vector_store %arg6[%c0_39, %c54], %28 {strides = array<i32>} : memref<36x324xf32, #tpu.memory_space<vmem>>, vector<12x18xf32>,
    %c0_40 = arith.constant 0 : index
    %c12_41 = arith.constant 12 : index
    %c1_42 = arith.constant 1 : index
    %30 = vector.load %arg1[%c0_40, %c12_41, %c1_42] : memref<1x80x20xf32, #tpu.memory_space<vmem>>, vector<1x12x18xf32>
    %31 = vector.shape_cast %30 : vector<1x12x18xf32> to vector<12x18xf32>
    %c12_43 = arith.constant 12 : index
    %c54_44 = arith.constant 54 : index
    %32 = vector.load %arg6[%c12_43, %c54_44] : memref<36x324xf32, #tpu.memory_space<vmem>>, vector<12x18xf32>
    tpu.vector_store %arg6[%c12_43, %c54_44], %31 {strides = array<i32>} : memref<36x324xf32, #tpu.memory_space<vmem>>, vector<12x18xf32>,
    %c0_45 = arith.constant 0 : index
    %c12_46 = arith.constant 12 : index
    %c2_47 = arith.constant 2 : index
    %33 = vector.load %arg1[%c0_45, %c12_46, %c2_47] : memref<1x80x20xf32, #tpu.memory_space<vmem>>, vector<1x12x18xf32>
    %34 = vector.shape_cast %33 : vector<1x12x18xf32> to vector<12x18xf32>
    %c24_48 = arith.constant 24 : index
    %c54_49 = arith.constant 54 : index
    %35 = vector.load %arg6[%c24_48, %c54_49] : memref<36x324xf32, #tpu.memory_space<vmem>>, vector<12x18xf32>
    tpu.vector_store %arg6[%c24_48, %c54_49], %34 {strides = array<i32>} : memref<36x324xf32, #tpu.memory_space<vmem>>, vector<12x18xf32>,
    %c0_50 = arith.constant 0 : index
    %c16 = arith.constant 16 : index
    %c0_51 = arith.constant 0 : index
    %36 = vector.load %arg1[%c0_50, %c16, %c0_51] : memref<1x80x20xf32, #tpu.memory_space<vmem>>, vector<1x12x18xf32>
    %37 = vector.shape_cast %36 : vector<1x12x18xf32> to vector<12x18xf32>
    %c0_52 = arith.constant 0 : index
    %c72 = arith.constant 72 : index
    %38 = vector.load %arg6[%c0_52, %c72] : memref<36x324xf32, #tpu.memory_space<vmem>>, vector<12x18xf32>
    tpu.vector_store %arg6[%c0_52, %c72], %37 {strides = array<i32>} : memref<36x324xf32, #tpu.memory_space<vmem>>, vector<12x18xf32>,
    %c0_53 = arith.constant 0 : index
    %c16_54 = arith.constant 16 : index
    %c1_55 = arith.constant 1 : index
    %39 = vector.load %arg1[%c0_53, %c16_54, %c1_55] : memref<1x80x20xf32, #tpu.memory_space<vmem>>, vector<1x12x18xf32>
    %40 = vector.shape_cast %39 : vector<1x12x18xf32> to vector<12x18xf32>
    %c12_56 = arith.constant 12 : index
    %c72_57 = arith.constant 72 : index
    %41 = vector.load %arg6[%c12_56, %c72_57] : memref<36x324xf32, #tpu.memory_space<vmem>>, vector<12x18xf32>
    tpu.vector_store %arg6[%c12_56, %c72_57], %40 {strides = array<i32>} : memref<36x324xf32, #tpu.memory_space<vmem>>, vector<12x18xf32>,
    %c0_58 = arith.constant 0 : index
    %c16_59 = arith.constant 16 : index
    %c2_60 = arith.constant 2 : index
    %42 = vector.load %arg1[%c0_58, %c16_59, %c2_60] : memref<1x80x20xf32, #tpu.memory_space<vmem>>, vector<1x12x18xf32>
    %43 = vector.shape_cast %42 : vector<1x12x18xf32> to vector<12x18xf32>
    %c24_61 = arith.constant 24 : index
    %c72_62 = arith.constant 72 : index
    %44 = vector.load %arg6[%c24_61, %c72_62] : memref<36x324xf32, #tpu.memory_space<vmem>>, vector<12x18xf32>
    tpu.vector_store %arg6[%c24_61, %c72_62], %43 {strides = array<i32>} : memref<36x324xf32, #tpu.memory_space<vmem>>, vector<12x18xf32>,
    %c0_63 = arith.constant 0 : index
    %c20 = arith.constant 20 : index
    %c0_64 = arith.constant 0 : index
    %45 = vector.load %arg1[%c0_63, %c20, %c0_64] : memref<1x80x20xf32, #tpu.memory_space<vmem>>, vector<1x12x18xf32>
    %46 = vector.shape_cast %45 : vector<1x12x18xf32> to vector<12x18xf32>
    %c0_65 = arith.constant 0 : index
    %c90 = arith.constant 90 : index
    %47 = vector.load %arg6[%c0_65, %c90] : memref<36x324xf32, #tpu.memory_space<vmem>>, vector<12x18xf32>
    tpu.vector_store %arg6[%c0_65, %c90], %46 {strides = array<i32>} : memref<36x324xf32, #tpu.memory_space<vmem>>, vector<12x18xf32>,
    %c0_66 = arith.constant 0 : index
    %c20_67 = arith.constant 20 : index
    %c1_68 = arith.constant 1 : index
    %48 = vector.load %arg1[%c0_66, %c20_67, %c1_68] : memref<1x80x20xf32, #tpu.memory_space<vmem>>, vector<1x12x18xf32>
    %49 = vector.shape_cast %48 : vector<1x12x18xf32> to vector<12x18xf32>
    %c12_69 = arith.constant 12 : index
    %c90_70 = arith.constant 90 : index
    %50 = vector.load %arg6[%c12_69, %c90_70] : memref<36x324xf32, #tpu.memory_space<vmem>>, vector<12x18xf32>
    tpu.vector_store %arg6[%c12_69, %c90_70], %49 {strides = array<i32>} : memref<36x324xf32, #tpu.memory_space<vmem>>, vector<12x18xf32>,
    %c0_71 = arith.constant 0 : index
    %c20_72 = arith.constant 20 : index
    %c2_73 = arith.constant 2 : index
    %51 = vector.load %arg1[%c0_71, %c20_72, %c2_73] : memref<1x80x20xf32, #tpu.memory_space<vmem>>, vector<1x12x18xf32>
    %52 = vector.shape_cast %51 : vector<1x12x18xf32> to vector<12x18xf32>
    %c24_74 = arith.constant 24 : index
    %c90_75 = arith.constant 90 : index
    %53 = vector.load %arg6[%c24_74, %c90_75] : memref<36x324xf32, #tpu.memory_space<vmem>>, vector<12x18xf32>
    tpu.vector_store %arg6[%c24_74, %c90_75], %52 {strides = array<i32>} : memref<36x324xf32, #tpu.memory_space<vmem>>, vector<12x18xf32>,
    %c0_76 = arith.constant 0 : index
    %c24_77 = arith.constant 24 : index
    %c0_78 = arith.constant 0 : index
    %54 = vector.load %arg1[%c0_76, %c24_77, %c0_78] : memref<1x80x20xf32, #tpu.memory_space<vmem>>, vector<1x12x18xf32>
    %55 = vector.shape_cast %54 : vector<1x12x18xf32> to vector<12x18xf32>
    %c0_79 = arith.constant 0 : index
    %c108 = arith.constant 108 : index
    %56 = vector.load %arg6[%c0_79, %c108] : memref<36x324xf32, #tpu.memory_space<vmem>>, vector<12x18xf32>
    tpu.vector_store %arg6[%c0_79, %c108], %55 {strides = array<i32>} : memref<36x324xf32, #tpu.memory_space<vmem>>, vector<12x18xf32>,
    %c0_80 = arith.constant 0 : index
    %c24_81 = arith.constant 24 : index
    %c1_82 = arith.constant 1 : index
    %57 = vector.load %arg1[%c0_80, %c24_81, %c1_82] : memref<1x80x20xf32, #tpu.memory_space<vmem>>, vector<1x12x18xf32>
    %58 = vector.shape_cast %57 : vector<1x12x18xf32> to vector<12x18xf32>
    %c12_83 = arith.constant 12 : index
    %c108_84 = arith.constant 108 : index
    %59 = vector.load %arg6[%c12_83, %c108_84] : memref<36x324xf32, #tpu.memory_space<vmem>>, vector<12x18xf32>
    tpu.vector_store %arg6[%c12_83, %c108_84], %58 {strides = array<i32>} : memref<36x324xf32, #tpu.memory_space<vmem>>, vector<12x18xf32>,
    %c0_85 = arith.constant 0 : index
    %c24_86 = arith.constant 24 : index
    %c2_87 = arith.constant 2 : index
    %60 = vector.load %arg1[%c0_85, %c24_86, %c2_87] : memref<1x80x20xf32, #tpu.memory_space<vmem>>, vector<1x12x18xf32>
    %61 = vector.shape_cast %60 : vector<1x12x18xf32> to vector<12x18xf32>
    %c24_88 = arith.constant 24 : index
    %c108_89 = arith.constant 108 : index
    %62 = vector.load %arg6[%c24_88, %c108_89] : memref<36x324xf32, #tpu.memory_space<vmem>>, vector<12x18xf32>
    tpu.vector_store %arg6[%c24_88, %c108_89], %61 {strides = array<i32>} : memref<36x324xf32, #tpu.memory_space<vmem>>, vector<12x18xf32>,
    %c0_90 = arith.constant 0 : index
    %c28 = arith.constant 28 : index
    %c0_91 = arith.constant 0 : index
    %63 = vector.load %arg1[%c0_90, %c28, %c0_91] : memref<1x80x20xf32, #tpu.memory_space<vmem>>, vector<1x12x18xf32>
    %64 = vector.shape_cast %63 : vector<1x12x18xf32> to vector<12x18xf32>
    %c0_92 = arith.constant 0 : index
    %c126 = arith.constant 126 : index
    %65 = vector.load %arg6[%c0_92, %c126] : memref<36x324xf32, #tpu.memory_space<vmem>>, vector<12x18xf32>
    tpu.vector_store %arg6[%c0_92, %c126], %64 {strides = array<i32>} : memref<36x324xf32, #tpu.memory_space<vmem>>, vector<12x18xf32>,
    %c0_93 = arith.constant 0 : index
    %c28_94 = arith.constant 28 : index
    %c1_95 = arith.constant 1 : index
    %66 = vector.load %arg1[%c0_93, %c28_94, %c1_95] : memref<1x80x20xf32, #tpu.memory_space<vmem>>, vector<1x12x18xf32>
    %67 = vector.shape_cast %66 : vector<1x12x18xf32> to vector<12x18xf32>
    %c12_96 = arith.constant 12 : index
    %c126_97 = arith.constant 126 : index
    %68 = vector.load %arg6[%c12_96, %c126_97] : memref<36x324xf32, #tpu.memory_space<vmem>>, vector<12x18xf32>
    tpu.vector_store %arg6[%c12_96, %c126_97], %67 {strides = array<i32>} : memref<36x324xf32, #tpu.memory_space<vmem>>, vector<12x18xf32>,
    %c0_98 = arith.constant 0 : index
    %c28_99 = arith.constant 28 : index
    %c2_100 = arith.constant 2 : index
    %69 = vector.load %arg1[%c0_98, %c28_99, %c2_100] : memref<1x80x20xf32, #tpu.memory_space<vmem>>, vector<1x12x18xf32>
    %70 = vector.shape_cast %69 : vector<1x12x18xf32> to vector<12x18xf32>
    %c24_101 = arith.constant 24 : index
    %c126_102 = arith.constant 126 : index
    %71 = vector.load %arg6[%c24_101, %c126_102] : memref<36x324xf32, #tpu.memory_space<vmem>>, vector<12x18xf32>
    tpu.vector_store %arg6[%c24_101, %c126_102], %70 {strides = array<i32>} : memref<36x324xf32, #tpu.memory_space<vmem>>, vector<12x18xf32>,
    %c0_103 = arith.constant 0 : index
    %c32 = arith.constant 32 : index
    %c0_104 = arith.constant 0 : index
    %72 = vector.load %arg1[%c0_103, %c32, %c0_104] : memref<1x80x20xf32, #tpu.memory_space<vmem>>, vector<1x12x18xf32>
    %73 = vector.shape_cast %72 : vector<1x12x18xf32> to vector<12x18xf32>
    %c0_105 = arith.constant 0 : index
    %c144 = arith.constant 144 : index
    %74 = vector.load %arg6[%c0_105, %c144] : memref<36x324xf32, #tpu.memory_space<vmem>>, vector<12x18xf32>
    tpu.vector_store %arg6[%c0_105, %c144], %73 {strides = array<i32>} : memref<36x324xf32, #tpu.memory_space<vmem>>, vector<12x18xf32>,
    %c0_106 = arith.constant 0 : index
    %c32_107 = arith.constant 32 : index
    %c1_108 = arith.constant 1 : index
    %75 = vector.load %arg1[%c0_106, %c32_107, %c1_108] : memref<1x80x20xf32, #tpu.memory_space<vmem>>, vector<1x12x18xf32>
    %76 = vector.shape_cast %75 : vector<1x12x18xf32> to vector<12x18xf32>
    %c12_109 = arith.constant 12 : index
    %c144_110 = arith.constant 144 : index
    %77 = vector.load %arg6[%c12_109, %c144_110] : memref<36x324xf32, #tpu.memory_space<vmem>>, vector<12x18xf32>
    tpu.vector_store %arg6[%c12_109, %c144_110], %76 {strides = array<i32>} : memref<36x324xf32, #tpu.memory_space<vmem>>, vector<12x18xf32>,
    %c0_111 = arith.constant 0 : index
    %c32_112 = arith.constant 32 : index
    %c2_113 = arith.constant 2 : index
    %78 = vector.load %arg1[%c0_111, %c32_112, %c2_113] : memref<1x80x20xf32, #tpu.memory_space<vmem>>, vector<1x12x18xf32>
    %79 = vector.shape_cast %78 : vector<1x12x18xf32> to vector<12x18xf32>
    %c24_114 = arith.constant 24 : index
    %c144_115 = arith.constant 144 : index
    %80 = vector.load %arg6[%c24_114, %c144_115] : memref<36x324xf32, #tpu.memory_space<vmem>>, vector<12x18xf32>
    tpu.vector_store %arg6[%c24_114, %c144_115], %79 {strides = array<i32>} : memref<36x324xf32, #tpu.memory_space<vmem>>, vector<12x18xf32>,
    %c0_116 = arith.constant 0 : index
    %c36_117 = arith.constant 36 : index
    %c0_118 = arith.constant 0 : index
    %81 = vector.load %arg1[%c0_116, %c36_117, %c0_118] : memref<1x80x20xf32, #tpu.memory_space<vmem>>, vector<1x12x18xf32>
    %82 = vector.shape_cast %81 : vector<1x12x18xf32> to vector<12x18xf32>
    %c0_119 = arith.constant 0 : index
    %c162 = arith.constant 162 : index
    %83 = vector.load %arg6[%c0_119, %c162] : memref<36x324xf32, #tpu.memory_space<vmem>>, vector<12x18xf32>
    tpu.vector_store %arg6[%c0_119, %c162], %82 {strides = array<i32>} : memref<36x324xf32, #tpu.memory_space<vmem>>, vector<12x18xf32>,
    %c0_120 = arith.constant 0 : index
    %c36_121 = arith.constant 36 : index
    %c1_122 = arith.constant 1 : index
    %84 = vector.load %arg1[%c0_120, %c36_121, %c1_122] : memref<1x80x20xf32, #tpu.memory_space<vmem>>, vector<1x12x18xf32>
    %85 = vector.shape_cast %84 : vector<1x12x18xf32> to vector<12x18xf32>
    %c12_123 = arith.constant 12 : index
    %c162_124 = arith.constant 162 : index
    %86 = vector.load %arg6[%c12_123, %c162_124] : memref<36x324xf32, #tpu.memory_space<vmem>>, vector<12x18xf32>
    tpu.vector_store %arg6[%c12_123, %c162_124], %85 {strides = array<i32>} : memref<36x324xf32, #tpu.memory_space<vmem>>, vector<12x18xf32>,
    %c0_125 = arith.constant 0 : index
    %c36_126 = arith.constant 36 : index
    %c2_127 = arith.constant 2 : index
    %87 = vector.load %arg1[%c0_125, %c36_126, %c2_127] : memref<1x80x20xf32, #tpu.memory_space<vmem>>, vector<1x12x18xf32>
    %88 = vector.shape_cast %87 : vector<1x12x18xf32> to vector<12x18xf32>
    %c24_128 = arith.constant 24 : index
    %c162_129 = arith.constant 162 : index
    %89 = vector.load %arg6[%c24_128, %c162_129] : memref<36x324xf32, #tpu.memory_space<vmem>>, vector<12x18xf32>
    tpu.vector_store %arg6[%c24_128, %c162_129], %88 {strides = array<i32>} : memref<36x324xf32, #tpu.memory_space<vmem>>, vector<12x18xf32>,
    %c0_130 = arith.constant 0 : index
    %c40 = arith.constant 40 : index
    %c0_131 = arith.constant 0 : index
    %90 = vector.load %arg1[%c0_130, %c40, %c0_131] : memref<1x80x20xf32, #tpu.memory_space<vmem>>, vector<1x12x18xf32>
    %91 = vector.shape_cast %90 : vector<1x12x18xf32> to vector<12x18xf32>
    %c0_132 = arith.constant 0 : index
    %c180 = arith.constant 180 : index
    %92 = vector.load %arg6[%c0_132, %c180] : memref<36x324xf32, #tpu.memory_space<vmem>>, vector<12x18xf32>
    tpu.vector_store %arg6[%c0_132, %c180], %91 {strides = array<i32>} : memref<36x324xf32, #tpu.memory_space<vmem>>, vector<12x18xf32>,
    %c0_133 = arith.constant 0 : index
    %c40_134 = arith.constant 40 : index
    %c1_135 = arith.constant 1 : index
    %93 = vector.load %arg1[%c0_133, %c40_134, %c1_135] : memref<1x80x20xf32, #tpu.memory_space<vmem>>, vector<1x12x18xf32>
    %94 = vector.shape_cast %93 : vector<1x12x18xf32> to vector<12x18xf32>
    %c12_136 = arith.constant 12 : index
    %c180_137 = arith.constant 180 : index
    %95 = vector.load %arg6[%c12_136, %c180_137] : memref<36x324xf32, #tpu.memory_space<vmem>>, vector<12x18xf32>
    tpu.vector_store %arg6[%c12_136, %c180_137], %94 {strides = array<i32>} : memref<36x324xf32, #tpu.memory_space<vmem>>, vector<12x18xf32>,
    %c0_138 = arith.constant 0 : index
    %c40_139 = arith.constant 40 : index
    %c2_140 = arith.constant 2 : index
    %96 = vector.load %arg1[%c0_138, %c40_139, %c2_140] : memref<1x80x20xf32, #tpu.memory_space<vmem>>, vector<1x12x18xf32>
    %97 = vector.shape_cast %96 : vector<1x12x18xf32> to vector<12x18xf32>
    %c24_141 = arith.constant 24 : index
    %c180_142 = arith.constant 180 : index
    %98 = vector.load %arg6[%c24_141, %c180_142] : memref<36x324xf32, #tpu.memory_space<vmem>>, vector<12x18xf32>
    tpu.vector_store %arg6[%c24_141, %c180_142], %97 {strides = array<i32>} : memref<36x324xf32, #tpu.memory_space<vmem>>, vector<12x18xf32>,
    %c0_143 = arith.constant 0 : index
    %c44 = arith.constant 44 : index
    %c0_144 = arith.constant 0 : index
    %99 = vector.load %arg1[%c0_143, %c44, %c0_144] : memref<1x80x20xf32, #tpu.memory_space<vmem>>, vector<1x12x18xf32>
    %100 = vector.shape_cast %99 : vector<1x12x18xf32> to vector<12x18xf32>
    %c0_145 = arith.constant 0 : index
    %c198 = arith.constant 198 : index
    %101 = vector.load %arg6[%c0_145, %c198] : memref<36x324xf32, #tpu.memory_space<vmem>>, vector<12x18xf32>
    tpu.vector_store %arg6[%c0_145, %c198], %100 {strides = array<i32>} : memref<36x324xf32, #tpu.memory_space<vmem>>, vector<12x18xf32>,
    %c0_146 = arith.constant 0 : index
    %c44_147 = arith.constant 44 : index
    %c1_148 = arith.constant 1 : index
    %102 = vector.load %arg1[%c0_146, %c44_147, %c1_148] : memref<1x80x20xf32, #tpu.memory_space<vmem>>, vector<1x12x18xf32>
    %103 = vector.shape_cast %102 : vector<1x12x18xf32> to vector<12x18xf32>
    %c12_149 = arith.constant 12 : index
    %c198_150 = arith.constant 198 : index
    %104 = vector.load %arg6[%c12_149, %c198_150] : memref<36x324xf32, #tpu.memory_space<vmem>>, vector<12x18xf32>
    tpu.vector_store %arg6[%c12_149, %c198_150], %103 {strides = array<i32>} : memref<36x324xf32, #tpu.memory_space<vmem>>, vector<12x18xf32>,
    %c0_151 = arith.constant 0 : index
    %c44_152 = arith.constant 44 : index
    %c2_153 = arith.constant 2 : index
    %105 = vector.load %arg1[%c0_151, %c44_152, %c2_153] : memref<1x80x20xf32, #tpu.memory_space<vmem>>, vector<1x12x18xf32>
    %106 = vector.shape_cast %105 : vector<1x12x18xf32> to vector<12x18xf32>
    %c24_154 = arith.constant 24 : index
    %c198_155 = arith.constant 198 : index
    %107 = vector.load %arg6[%c24_154, %c198_155] : memref<36x324xf32, #tpu.memory_space<vmem>>, vector<12x18xf32>
    tpu.vector_store %arg6[%c24_154, %c198_155], %106 {strides = array<i32>} : memref<36x324xf32, #tpu.memory_space<vmem>>, vector<12x18xf32>,
    %c0_156 = arith.constant 0 : index
    %c48 = arith.constant 48 : index
    %c0_157 = arith.constant 0 : index
    %108 = vector.load %arg1[%c0_156, %c48, %c0_157] : memref<1x80x20xf32, #tpu.memory_space<vmem>>, vector<1x12x18xf32>
    %109 = vector.shape_cast %108 : vector<1x12x18xf32> to vector<12x18xf32>
    %c0_158 = arith.constant 0 : index
    %c216 = arith.constant 216 : index
    %110 = vector.load %arg6[%c0_158, %c216] : memref<36x324xf32, #tpu.memory_space<vmem>>, vector<12x18xf32>
    tpu.vector_store %arg6[%c0_158, %c216], %109 {strides = array<i32>} : memref<36x324xf32, #tpu.memory_space<vmem>>, vector<12x18xf32>,
    %c0_159 = arith.constant 0 : index
    %c48_160 = arith.constant 48 : index
    %c1_161 = arith.constant 1 : index
    %111 = vector.load %arg1[%c0_159, %c48_160, %c1_161] : memref<1x80x20xf32, #tpu.memory_space<vmem>>, vector<1x12x18xf32>
    %112 = vector.shape_cast %111 : vector<1x12x18xf32> to vector<12x18xf32>
    %c12_162 = arith.constant 12 : index
    %c216_163 = arith.constant 216 : index
    %113 = vector.load %arg6[%c12_162, %c216_163] : memref<36x324xf32, #tpu.memory_space<vmem>>, vector<12x18xf32>
    tpu.vector_store %arg6[%c12_162, %c216_163], %112 {strides = array<i32>} : memref<36x324xf32, #tpu.memory_space<vmem>>, vector<12x18xf32>,
    %c0_164 = arith.constant 0 : index
    %c48_165 = arith.constant 48 : index
    %c2_166 = arith.constant 2 : index
    %114 = vector.load %arg1[%c0_164, %c48_165, %c2_166] : memref<1x80x20xf32, #tpu.memory_space<vmem>>, vector<1x12x18xf32>
    %115 = vector.shape_cast %114 : vector<1x12x18xf32> to vector<12x18xf32>
    %c24_167 = arith.constant 24 : index
    %c216_168 = arith.constant 216 : index
    %116 = vector.load %arg6[%c24_167, %c216_168] : memref<36x324xf32, #tpu.memory_space<vmem>>, vector<12x18xf32>
    tpu.vector_store %arg6[%c24_167, %c216_168], %115 {strides = array<i32>} : memref<36x324xf32, #tpu.memory_space<vmem>>, vector<12x18xf32>,
    %c0_169 = arith.constant 0 : index
    %c52 = arith.constant 52 : index
    %c0_170 = arith.constant 0 : index
    %117 = vector.load %arg1[%c0_169, %c52, %c0_170] : memref<1x80x20xf32, #tpu.memory_space<vmem>>, vector<1x12x18xf32>
    %118 = vector.shape_cast %117 : vector<1x12x18xf32> to vector<12x18xf32>
    %c0_171 = arith.constant 0 : index
    %c234 = arith.constant 234 : index
    %119 = vector.load %arg6[%c0_171, %c234] : memref<36x324xf32, #tpu.memory_space<vmem>>, vector<12x18xf32>
    tpu.vector_store %arg6[%c0_171, %c234], %118 {strides = array<i32>} : memref<36x324xf32, #tpu.memory_space<vmem>>, vector<12x18xf32>,
    %c0_172 = arith.constant 0 : index
    %c52_173 = arith.constant 52 : index
    %c1_174 = arith.constant 1 : index
    %120 = vector.load %arg1[%c0_172, %c52_173, %c1_174] : memref<1x80x20xf32, #tpu.memory_space<vmem>>, vector<1x12x18xf32>
    %121 = vector.shape_cast %120 : vector<1x12x18xf32> to vector<12x18xf32>
    %c12_175 = arith.constant 12 : index
    %c234_176 = arith.constant 234 : index
    %122 = vector.load %arg6[%c12_175, %c234_176] : memref<36x324xf32, #tpu.memory_space<vmem>>, vector<12x18xf32>
    tpu.vector_store %arg6[%c12_175, %c234_176], %121 {strides = array<i32>} : memref<36x324xf32, #tpu.memory_space<vmem>>, vector<12x18xf32>,
    %c0_177 = arith.constant 0 : index
    %c52_178 = arith.constant 52 : index
    %c2_179 = arith.constant 2 : index
    %123 = vector.load %arg1[%c0_177, %c52_178, %c2_179] : memref<1x80x20xf32, #tpu.memory_space<vmem>>, vector<1x12x18xf32>
    %124 = vector.shape_cast %123 : vector<1x12x18xf32> to vector<12x18xf32>
    %c24_180 = arith.constant 24 : index
    %c234_181 = arith.constant 234 : index
    %125 = vector.load %arg6[%c24_180, %c234_181] : memref<36x324xf32, #tpu.memory_space<vmem>>, vector<12x18xf32>
    tpu.vector_store %arg6[%c24_180, %c234_181], %124 {strides = array<i32>} : memref<36x324xf32, #tpu.memory_space<vmem>>, vector<12x18xf32>,
    %c0_182 = arith.constant 0 : index
    %c56 = arith.constant 56 : index
    %c0_183 = arith.constant 0 : index
    %126 = vector.load %arg1[%c0_182, %c56, %c0_183] : memref<1x80x20xf32, #tpu.memory_space<vmem>>, vector<1x12x18xf32>
    %127 = vector.shape_cast %126 : vector<1x12x18xf32> to vector<12x18xf32>
    %c0_184 = arith.constant 0 : index
    %c252 = arith.constant 252 : index
    %128 = vector.load %arg6[%c0_184, %c252] : memref<36x324xf32, #tpu.memory_space<vmem>>, vector<12x18xf32>
    tpu.vector_store %arg6[%c0_184, %c252], %127 {strides = array<i32>} : memref<36x324xf32, #tpu.memory_space<vmem>>, vector<12x18xf32>,
    %c0_185 = arith.constant 0 : index
    %c56_186 = arith.constant 56 : index
    %c1_187 = arith.constant 1 : index
    %129 = vector.load %arg1[%c0_185, %c56_186, %c1_187] : memref<1x80x20xf32, #tpu.memory_space<vmem>>, vector<1x12x18xf32>
    %130 = vector.shape_cast %129 : vector<1x12x18xf32> to vector<12x18xf32>
    %c12_188 = arith.constant 12 : index
    %c252_189 = arith.constant 252 : index
    %131 = vector.load %arg6[%c12_188, %c252_189] : memref<36x324xf32, #tpu.memory_space<vmem>>, vector<12x18xf32>
    tpu.vector_store %arg6[%c12_188, %c252_189], %130 {strides = array<i32>} : memref<36x324xf32, #tpu.memory_space<vmem>>, vector<12x18xf32>,
    %c0_190 = arith.constant 0 : index
    %c56_191 = arith.constant 56 : index
    %c2_192 = arith.constant 2 : index
    %132 = vector.load %arg1[%c0_190, %c56_191, %c2_192] : memref<1x80x20xf32, #tpu.memory_space<vmem>>, vector<1x12x18xf32>
    %133 = vector.shape_cast %132 : vector<1x12x18xf32> to vector<12x18xf32>
    %c24_193 = arith.constant 24 : index
    %c252_194 = arith.constant 252 : index
    %134 = vector.load %arg6[%c24_193, %c252_194] : memref<36x324xf32, #tpu.memory_space<vmem>>, vector<12x18xf32>
    tpu.vector_store %arg6[%c24_193, %c252_194], %133 {strides = array<i32>} : memref<36x324xf32, #tpu.memory_space<vmem>>, vector<12x18xf32>,
    %c0_195 = arith.constant 0 : index
    %c60 = arith.constant 60 : index
    %c0_196 = arith.constant 0 : index
    %135 = vector.load %arg1[%c0_195, %c60, %c0_196] : memref<1x80x20xf32, #tpu.memory_space<vmem>>, vector<1x12x18xf32>
    %136 = vector.shape_cast %135 : vector<1x12x18xf32> to vector<12x18xf32>
    %c0_197 = arith.constant 0 : index
    %c270 = arith.constant 270 : index
    %137 = vector.load %arg6[%c0_197, %c270] : memref<36x324xf32, #tpu.memory_space<vmem>>, vector<12x18xf32>
    tpu.vector_store %arg6[%c0_197, %c270], %136 {strides = array<i32>} : memref<36x324xf32, #tpu.memory_space<vmem>>, vector<12x18xf32>,
    %c0_198 = arith.constant 0 : index
    %c60_199 = arith.constant 60 : index
    %c1_200 = arith.constant 1 : index
    %138 = vector.load %arg1[%c0_198, %c60_199, %c1_200] : memref<1x80x20xf32, #tpu.memory_space<vmem>>, vector<1x12x18xf32>
    %139 = vector.shape_cast %138 : vector<1x12x18xf32> to vector<12x18xf32>
    %c12_201 = arith.constant 12 : index
    %c270_202 = arith.constant 270 : index
    %140 = vector.load %arg6[%c12_201, %c270_202] : memref<36x324xf32, #tpu.memory_space<vmem>>, vector<12x18xf32>
    tpu.vector_store %arg6[%c12_201, %c270_202], %139 {strides = array<i32>} : memref<36x324xf32, #tpu.memory_space<vmem>>, vector<12x18xf32>,
    %c0_203 = arith.constant 0 : index
    %c60_204 = arith.constant 60 : index
    %c2_205 = arith.constant 2 : index
    %141 = vector.load %arg1[%c0_203, %c60_204, %c2_205] : memref<1x80x20xf32, #tpu.memory_space<vmem>>, vector<1x12x18xf32>
    %142 = vector.shape_cast %141 : vector<1x12x18xf32> to vector<12x18xf32>
    %c24_206 = arith.constant 24 : index
    %c270_207 = arith.constant 270 : index
    %143 = vector.load %arg6[%c24_206, %c270_207] : memref<36x324xf32, #tpu.memory_space<vmem>>, vector<12x18xf32>
    tpu.vector_store %arg6[%c24_206, %c270_207], %142 {strides = array<i32>} : memref<36x324xf32, #tpu.memory_space<vmem>>, vector<12x18xf32>,
    %c0_208 = arith.constant 0 : index
    %c64 = arith.constant 64 : index
    %c0_209 = arith.constant 0 : index
    %144 = vector.load %arg1[%c0_208, %c64, %c0_209] : memref<1x80x20xf32, #tpu.memory_space<vmem>>, vector<1x12x18xf32>
    %145 = vector.shape_cast %144 : vector<1x12x18xf32> to vector<12x18xf32>
    %c0_210 = arith.constant 0 : index
    %c288 = arith.constant 288 : index
    %146 = vector.load %arg6[%c0_210, %c288] : memref<36x324xf32, #tpu.memory_space<vmem>>, vector<12x18xf32>
    tpu.vector_store %arg6[%c0_210, %c288], %145 {strides = array<i32>} : memref<36x324xf32, #tpu.memory_space<vmem>>, vector<12x18xf32>,
    %c0_211 = arith.constant 0 : index
    %c64_212 = arith.constant 64 : index
    %c1_213 = arith.constant 1 : index
    %147 = vector.load %arg1[%c0_211, %c64_212, %c1_213] : memref<1x80x20xf32, #tpu.memory_space<vmem>>, vector<1x12x18xf32>
    %148 = vector.shape_cast %147 : vector<1x12x18xf32> to vector<12x18xf32>
    %c12_214 = arith.constant 12 : index
    %c288_215 = arith.constant 288 : index
    %149 = vector.load %arg6[%c12_214, %c288_215] : memref<36x324xf32, #tpu.memory_space<vmem>>, vector<12x18xf32>
    tpu.vector_store %arg6[%c12_214, %c288_215], %148 {strides = array<i32>} : memref<36x324xf32, #tpu.memory_space<vmem>>, vector<12x18xf32>,
    %c0_216 = arith.constant 0 : index
    %c64_217 = arith.constant 64 : index
    %c2_218 = arith.constant 2 : index
    %150 = vector.load %arg1[%c0_216, %c64_217, %c2_218] : memref<1x80x20xf32, #tpu.memory_space<vmem>>, vector<1x12x18xf32>
    %151 = vector.shape_cast %150 : vector<1x12x18xf32> to vector<12x18xf32>
    %c24_219 = arith.constant 24 : index
    %c288_220 = arith.constant 288 : index
    %152 = vector.load %arg6[%c24_219, %c288_220] : memref<36x324xf32, #tpu.memory_space<vmem>>, vector<12x18xf32>
    tpu.vector_store %arg6[%c24_219, %c288_220], %151 {strides = array<i32>} : memref<36x324xf32, #tpu.memory_space<vmem>>, vector<12x18xf32>,
    %c0_221 = arith.constant 0 : index
    %c68 = arith.constant 68 : index
    %c0_222 = arith.constant 0 : index
    %153 = vector.load %arg1[%c0_221, %c68, %c0_222] : memref<1x80x20xf32, #tpu.memory_space<vmem>>, vector<1x12x18xf32>
    %154 = vector.shape_cast %153 : vector<1x12x18xf32> to vector<12x18xf32>
    %c0_223 = arith.constant 0 : index
    %c306 = arith.constant 306 : index
    %155 = vector.load %arg6[%c0_223, %c306] : memref<36x324xf32, #tpu.memory_space<vmem>>, vector<12x18xf32>
    tpu.vector_store %arg6[%c0_223, %c306], %154 {strides = array<i32>} : memref<36x324xf32, #tpu.memory_space<vmem>>, vector<12x18xf32>,
    %c0_224 = arith.constant 0 : index
    %c68_225 = arith.constant 68 : index
    %c1_226 = arith.constant 1 : index
    %156 = vector.load %arg1[%c0_224, %c68_225, %c1_226] : memref<1x80x20xf32, #tpu.memory_space<vmem>>, vector<1x12x18xf32>
    %157 = vector.shape_cast %156 : vector<1x12x18xf32> to vector<12x18xf32>
    %c12_227 = arith.constant 12 : index
    %c306_228 = arith.constant 306 : index
    %158 = vector.load %arg6[%c12_227, %c306_228] : memref<36x324xf32, #tpu.memory_space<vmem>>, vector<12x18xf32>
    tpu.vector_store %arg6[%c12_227, %c306_228], %157 {strides = array<i32>} : memref<36x324xf32, #tpu.memory_space<vmem>>, vector<12x18xf32>,
    %c0_229 = arith.constant 0 : index
    %c68_230 = arith.constant 68 : index
    %c2_231 = arith.constant 2 : index
    %159 = vector.load %arg1[%c0_229, %c68_230, %c2_231] : memref<1x80x20xf32, #tpu.memory_space<vmem>>, vector<1x12x18xf32>
    %160 = vector.shape_cast %159 : vector<1x12x18xf32> to vector<12x18xf32>
    %c24_232 = arith.constant 24 : index
    %c306_233 = arith.constant 306 : index
    %161 = vector.load %arg6[%c24_232, %c306_233] : memref<36x324xf32, #tpu.memory_space<vmem>>, vector<12x18xf32>
    tpu.vector_store %arg6[%c24_232, %c306_233], %160 {strides = array<i32>} : memref<36x324xf32, #tpu.memory_space<vmem>>, vector<12x18xf32>,
    %c0_234 = arith.constant 0 : index
    %c0_235 = arith.constant 0 : index
    %162 = vector.load %arg2[%c0_234, %c0_235] : memref<8x36xf32, #tpu.memory_space<vmem>>, vector<8x36xf32>
    %c0_236 = arith.constant 0 : index
    %c0_237 = arith.constant 0 : index
    %163 = vector.load %arg6[%c0_236, %c0_237] : memref<36x324xf32, #tpu.memory_space<vmem>>, vector<36x324xf32>
    %cst = arith.constant dense<0.000000e+00> : vector<8x324xf32>
    %164 = tpu.matmul %162, %163, %cst {dimension_numbers = #tpu.dot_dimension_numbers<[1], [0], [0], [1], [0, 0, 1, 1], [], []>} : vector<8x36xf32>, vector<36x324xf32>, vector<8x324xf32> -> vector<8x324xf32>
    %c0_238 = arith.constant 0 : index
    %c0_239 = arith.constant 0 : index
    %c0_240 = arith.constant 0 : index
    %165 = vector.load %arg3[%c0_238, %c0_239, %c0_240] : memref<1x8x324xf32, #tpu.memory_space<vmem>>, vector<1x8x324xf32>
    %166 = vector.shape_cast %165 : vector<1x8x324xf32> to vector<8x324xf32>
    %167 = vector.shape_cast %164 : vector<8x324xf32> to vector<1x8x324xf32>
    tpu.vector_store %arg3[%c0_238, %c0_239, %c0_240], %167 {strides = array<i32>} : memref<1x8x324xf32, #tpu.memory_space<vmem>>, vector<1x8x324xf32>,
    %cst_241 = arith.constant dense<0.000000e+00> : vector<8xf32>
    %168 = vector.multi_reduction <add>, %164, %cst_241 [1] : vector<8x324xf32> to vector<8xf32>
    %169 = vector.shape_cast %168 : vector<8xf32> to vector<8x1xf32>
    %c0_242 = arith.constant 0 : index
    %c0_243 = arith.constant 0 : index
    %c0_244 = arith.constant 0 : index
    %170 = vector.load %arg4[%c0_242, %c0_243, %c0_244] : memref<1x8x1xf32, #tpu.memory_space<vmem>>, vector<1x8x1xf32>
    %171 = vector.shape_cast %170 : vector<1x8x1xf32> to vector<8x1xf32>
    %172 = vector.shape_cast %169 : vector<8x1xf32> to vector<1x8x1xf32>
    tpu.vector_store %arg4[%c0_242, %c0_243, %c0_244], %172 {strides = array<i32>} : memref<1x8x1xf32, #tpu.memory_space<vmem>>, vector<1x8x1xf32>,
    %173 = arith.mulf %164, %164 : vector<8x324xf32>
    %cst_245 = arith.constant dense<0.000000e+00> : vector<8xf32>
    %174 = vector.multi_reduction <add>, %173, %cst_245 [1] : vector<8x324xf32> to vector<8xf32>
    %175 = vector.shape_cast %174 : vector<8xf32> to vector<8x1xf32>
    %c0_246 = arith.constant 0 : index
    %c0_247 = arith.constant 0 : index
    %c0_248 = arith.constant 0 : index
    %176 = vector.load %arg5[%c0_246, %c0_247, %c0_248] : memref<1x8x1xf32, #tpu.memory_space<vmem>>, vector<1x8x1xf32>
    %177 = vector.shape_cast %176 : vector<1x8x1xf32> to vector<8x1xf32>
    %178 = vector.shape_cast %175 : vector<8x1xf32> to vector<1x8x1xf32>
    tpu.vector_store %arg5[%c0_246, %c0_247, %c0_248], %178 {strides = array<i32>} : memref<1x8x1xf32, #tpu.memory_space<vmem>>, vector<1x8x1xf32>,
    return
  }
  func.func @transform_0(%arg0: i32) -> (i32, i32, i32) {
    %c0_i32 = arith.constant 0 : i32
    %c0_i32_0 = arith.constant 0 : i32
    %c0_i32_1 = arith.constant 0 : i32
    return %arg0, %c0_i32, %c0_i32_0 : i32, i32, i32
  }
  func.func @transform_1(%arg0: i32) -> (i32, i32) {
    %c0_i32 = arith.constant 0 : i32
    %c0_i32_0 = arith.constant 0 : i32
    %c0_i32_1 = arith.constant 0 : i32
    return %c0_i32, %c0_i32_0 : i32, i32
  }
  func.func @transform_2(%arg0: i32) -> (i32, i32, i32) {
    %c0_i32 = arith.constant 0 : i32
    %c0_i32_0 = arith.constant 0 : i32
    %c0_i32_1 = arith.constant 0 : i32
    return %arg0, %c0_i32, %c0_i32_0 : i32, i32, i32
  }
  func.func @transform_3(%arg0: i32) -> (i32, i32, i32) {
    %c0_i32 = arith.constant 0 : i32
    %c0_i32_0 = arith.constant 0 : i32
    %c0_i32_1 = arith.constant 0 : i32
    return %arg0, %c0_i32, %c0_i32_0 : i32, i32, i32
  }
  func.func @transform_4(%arg0: i32) -> (i32, i32, i32) {
    %c0_i32 = arith.constant 0 : i32
    %c0_i32_0 = arith.constant 0 : i32
    %c0_i32_1 = arith.constant 0 : i32
    return %arg0, %c0_i32, %c0_i32_0 : i32, i32, i32
  }
}

</mosaic_0001>

<llo_original>
// kernel: tpu_custom_call.1
$region0: #{tpu_custom_call.1}
  #allocation0 [shape = 'u32[]', space=smem, size = 0x4, offset = 0x4, fixed_abs, tag = 'smem constant byte address 0x4 - core index']
  #allocation1 [shape = 'u32[144,128]{1,0:T(1,128)}', space=vmem, size = 0x12000, scoped, tag = 'internal scratch']
  #allocation2 [shape = 'f32[36,324]{1,0:T(8,128)}', space=vmem, size = 0xf000, scoped, tag = 'scratch operand']
  %s0 = inlined_call_operand.vmem [shape: f32[2,80,20], index: 0, kind: input, shape index: {}]
  %s1 = inlined_call_operand.vmem [shape: f32[8,36], index: 1, kind: input, shape index: {}]
  %s2 = inlined_call_operand.hbm [shape: f32[2,8,324], index: 2, kind: output, shape index: {0}]
  %s3 = inlined_call_operand.vmem [shape: f32[2,8,1], index: 3, kind: output, shape index: {1}]
  %s4 = inlined_call_operand.vmem [shape: f32[2,8,1], index: 4, kind: output, shape index: {2}]
  %5 = xla_tuple %s2, %s3, %s4
  %s6 = sld [smem:[#allocation0]]
  $region57: #{tpu_custom_call.1} parent=0
    _
  %s8 = ssub.s32 1, %s6
  %s9 = scalar_select 0, %s8, %s6
  $region1: #{tpu_custom_call.1} parent=0
    #allocation3 [shape = 'u8[24576]{0}', space=vmem, size = 0x6000, scoped, tag = 'output window, operand 0']
    #allocation4 [shape = 's32[2]{0}', space=sflag, size = 0x8, scoped, tag = 'scoped memory for tpu_custom_call.1']
    %10 = vsyncpa [#allocation4], 0
    %s11 = scalar_lea.sflag [#allocation4], 1
    %12 = vsyncpa %s11, 0
    loop: start=0, step=1, limit=4
    $region2: #{tpu_custom_call.1} parent=1 // loop_pre_header
      _
    $region3: #{tpu_custom_call.1} parent=1 // loop_header
      %s14 = sphi 0, %s18
      %p15 = scmp.ge.s32.totalorder %s14, 4
      %s24 = sphi 0, %s26
      %s27 = sphi 0, %s24
      %s28 = sphi 0, %s27
      %s44 = sphi 0, %s28
      %s48 = sphi 0, %s48
      %s50 = sphi 0, %s48
      %s51 = sphi 0, %s50
      %s65 = sphi 0, %s51
      %s71 = sphi 0, %s73
      %s74 = sphi 0, %s71
      %s75 = sphi 0, %s74
      %s91 = sphi 0, %s75
      %s97 = sphi 0, %s99
      %s100 = sphi 0, %s97
      %s101 = sphi 0, %s100
      %s117 = sphi 0, %s101
      %s123 = sphi 0, %s125
      %s126 = sphi 0, %s123
      %s127 = sphi 0, %s126
      %s143 = sphi 0, %s127
    $region4: #{tpu_custom_call.1} parent=1 // loop_header_branch
      %17 = sbr.rel (%p15) target = $region8
    $region5: #{tpu_custom_call.1} parent=1 // loop_body
      %s19 = ssub.s32 %s14, 1
      %s20 = ssub.s32 %s14, 2
      %s21 = sadd.s32 %s14, 1
      %s22 = ssub.s32 %s14, %s21
      %p23 = scmp.eq.s32.totalorder %s22, 0
      %s25 = sadd.s32 %s24, 1
      %s26 = scalar_select %p23, %s24, %s25
      %p29 = pneg %p23
      %p30 = scmp.eq.s32.totalorder %s14, 1
      %p31 = por %p29, %p30
      %p32 = scmp.ne.s32.totalorder %s24, %s27
      %p33 = scmp.eq.s32.totalorder %s14, 0
      %p34 = por %p32, %p33
      %p35 = scmp.ne.s32.totalorder %s24, %s27
      %p36 = scmp.eq.s32.totalorder %s19, 1
      %p37 = por %p35, %p36
      %p38 = scmp.ne.s32.totalorder %s27, %s28
      %p39 = scmp.eq.s32.totalorder %s19, 0
      %p40 = por %p38, %p39
      %p41 = scmp.ne.s32.totalorder %s27, %s28
      %p42 = scmp.eq.s32.totalorder %s20, 1
      %p43 = por %p41, %p42
      %p45 = scmp.ne.s32.totalorder %s28, %s44
      %p46 = scmp.eq.s32.totalorder %s20, 0
      %p47 = por %p45, %p46
      %s49 = sadd.s32 %s48, 1
      %p52 = scmp.eq.s32.totalorder %s14, 1
      %p53 = scmp.ne.s32.totalorder %s48, %s50
      %p54 = scmp.eq.s32.totalorder %s14, 0
      %p55 = por %p53, %p54
      %p56 = scmp.ne.s32.totalorder %s48, %s50
      %p57 = scmp.eq.s32.totalorder %s19, 1
      %p58 = por %p56, %p57
      %p59 = scmp.ne.s32.totalorder %s50, %s51
      %p60 = scmp.eq.s32.totalorder %s19, 0
      %p61 = por %p59, %p60
      %p62 = scmp.ne.s32.totalorder %s50, %s51
      %p63 = scmp.eq.s32.totalorder %s20, 1
      %p64 = por %p62, %p63
      %p66 = scmp.ne.s32.totalorder %s51, %s65
      %p67 = scmp.eq.s32.totalorder %s20, 0
      %p68 = por %p66, %p67
      %s69 = ssub.s32 %s14, %s21
      %p70 = scmp.eq.s32.totalorder %s69, 0
      %s72 = sadd.s32 %s71, 1
      %s73 = scalar_select %p70, %s71, %s72
      %p76 = pneg %p70
      %p77 = scmp.eq.s32.totalorder %s14, 1
      %p78 = por %p76, %p77
      %p79 = scmp.ne.s32.totalorder %s71, %s74
      %p80 = scmp.eq.s32.totalorder %s14, 0
      %p81 = por %p79, %p80
      %p82 = scmp.ne.s32.totalorder %s71, %s74
      %p83 = scmp.eq.s32.totalorder %s19, 1
      %p84 = por %p82, %p83
      %p85 = scmp.ne.s32.totalorder %s74, %s75
      %p86 = scmp.eq.s32.totalorder %s19, 0
      %p87 = por %p85, %p86
      %p88 = scmp.ne.s32.totalorder %s74, %s75
      %p89 = scmp.eq.s32.totalorder %s20, 1
      %p90 = por %p88, %p89
      %p92 = scmp.ne.s32.totalorder %s75, %s91
      %p93 = scmp.eq.s32.totalorder %s20, 0
      %p94 = por %p92, %p93
      %s95 = ssub.s32 %s14, %s21
      %p96 = scmp.eq.s32.totalorder %s95, 0
      %s98 = sadd.s32 %s97, 1
      %s99 = scalar_select %p96, %s97, %s98
      %p102 = pneg %p96
      %p103 = scmp.eq.s32.totalorder %s14, 1
      %p104 = por %p102, %p103
      %p105 = scmp.ne.s32.totalorder %s97, %s100
      %p106 = scmp.eq.s32.totalorder %s14, 0
      %p107 = por %p105, %p106
      %p108 = scmp.ne.s32.totalorder %s97, %s100
      %p109 = scmp.eq.s32.totalorder %s19, 1
      %p110 = por %p108, %p109
      %p111 = scmp.ne.s32.totalorder %s100, %s101
      %p112 = scmp.eq.s32.totalorder %s19, 0
      %p113 = por %p111, %p112
      %p114 = scmp.ne.s32.totalorder %s100, %s101
      %p115 = scmp.eq.s32.totalorder %s20, 1
      %p116 = por %p114, %p115
      %p118 = scmp.ne.s32.totalorder %s101, %s117
      %p119 = scmp.eq.s32.totalorder %s20, 0
      %p120 = por %p118, %p119
      %s121 = ssub.s32 %s14, %s21
      %p122 = scmp.eq.s32.totalorder %s121, 0
      %s124 = sadd.s32 %s123, 1
      %s125 = scalar_select %p122, %s123, %s124
      %p128 = pneg %p122
      %p129 = scmp.eq.s32.totalorder %s14, 1
      %p130 = por %p128, %p129
      %p131 = scmp.ne.s32.totalorder %s123, %s126
      %p132 = scmp.eq.s32.totalorder %s14, 0
      %p133 = por %p131, %p132
      %p134 = scmp.ne.s32.totalorder %s123, %s126
      %p135 = scmp.eq.s32.totalorder %s19, 1
      %p136 = por %p134, %p135
      %p137 = scmp.ne.s32.totalorder %s126, %s127
      %p138 = scmp.eq.s32.totalorder %s19, 0
      %p139 = por %p137, %p138
      %p140 = scmp.ne.s32.totalorder %s126, %s127
      %p141 = scmp.eq.s32.totalorder %s20, 1
      %p142 = por %p140, %p141
      %p144 = scmp.ne.s32.totalorder %s127, %s143
      %p145 = scmp.eq.s32.totalorder %s20, 0
      %p146 = por %p144, %p145
      %p147 = scmp.le.s32.totalorder 1, %s14
      %p148 = scmp.lt.s32.totalorder %s14, 3
      %p149 = pnand %p147, %p148
      %p150 = pneg %p149
      // Predicated region
      $region9: #{tpu_custom_call.1} parent=5 // pred_check
        _
      $region10: #{tpu_custom_call.1} parent=5 // pred_check_branch
        %152 = sbr.rel (%p149) target = $region12
      $region11: #{tpu_custom_call.1} parent=5 // pred_region
        %s153 = ssub.s32 %s14, 1
        // Predicated region
        $region13: #{tpu_custom_call.1} parent=11 // pred_check
          %p154 = pneg %p61
        $region14: #{tpu_custom_call.1} parent=11 // pred_check_branch
          %156 = sbr.rel (%p154) target = $region16
        $region15: #{tpu_custom_call.1} parent=11 // pred_region
          _
        $region16: #{tpu_custom_call.1} parent=11 // pred_fallthru
          _
      $region12: #{tpu_custom_call.1} parent=5 // pred_fallthru
        _
      %p157 = scmp.lt.s32.totalorder %s14, 2
      // Predicated region
      $region17: #{tpu_custom_call.1} parent=5 // pred_check
        %p158 = pneg %p157
      $region18: #{tpu_custom_call.1} parent=5 // pred_check_branch
        %160 = sbr.rel (%p158) target = $region20
      $region19: #{tpu_custom_call.1} parent=5 // pred_region
        // Predicated region
        $region21: #{tpu_custom_call.1} parent=19 // pred_check
          %p161 = pneg %p34
        $region22: #{tpu_custom_call.1} parent=19 // pred_check_branch
          %163 = sbr.rel (%p161) target = $region24
        $region23: #{tpu_custom_call.1} parent=19 // pred_region
          %p164 = scmp.lt.s32.totalorder %s14, 1
          %s165 = scalar_select %p164, %s14, 1
          %s166 = smul.addr %s165, 10
          %s167 = smul.addr %s166, 8
          %s168 = scalar_lea.vmem %s0, %s167
        $region24: #{tpu_custom_call.1} parent=19 // pred_fallthru
          _
      $region20: #{tpu_custom_call.1} parent=5 // pred_fallthru
        _
      %p169 = scmp.le.s32.totalorder 1, %s14
      %p170 = scmp.lt.s32.totalorder %s14, 3
      %p171 = pnand %p169, %p170
      %p172 = pneg %p171
      // Predicated region
      $region25: #{tpu_custom_call.1} parent=5 // pred_check
        _
      $region26: #{tpu_custom_call.1} parent=5 // pred_check_branch
        %174 = sbr.rel (%p171) target = $region28
      $region27: #{tpu_custom_call.1} parent=5 // pred_region
        %s175 = ssub.s32 %s14, 1
        %p176 = scmp.lt.s32.totalorder %s19, 1
        %s177 = scalar_select %p176, %s19, 1
        %s178 = smul.addr %s177, 10
        %s179 = smul.addr %s178, 8
        %s180 = scalar_lea.vmem %s0, %s179
        %p181 = pneg %p40
        %p182 = pneg %p37
        %p183 = pneg %p61
        %p184 = pneg %p58
        %p185 = pneg %p87
        %p186 = pneg %p84
        %s187 = sand.u32 %s74, 1
        %s188 = scalar_lea.sflag [#allocation4], %s187
        %s189 = sand.u32 %s74, 1
        %s190 = smul.addr %s189, 24
        %s191 = scalar_lea.vmem [#allocation3], %s190
        %p192 = pneg %p113
        %p193 = pneg %p110
        %p194 = scmp.lt.s32.totalorder %s19, 1
        %s195 = scalar_select %p194, %s19, 1
        %s196 = smul.addr %s195, 8
        %s197 = scalar_lea.vmem %s3, %s196
        %p198 = pneg %p139
        %p199 = pneg %p136
        %p200 = scmp.lt.s32.totalorder %s19, 1
        %s201 = scalar_select %p200, %s19, 1
        %s202 = smul.addr %s201, 8
        %s203 = scalar_lea.vmem %s4, %s202
        %p204 = scmp.lt.s32.totalorder %s19, 1
        %s205 = scalar_select %p204, %s19, 1
        %s206 = smul.addr %s205, 10
        %s207 = smul.addr %s206, 8
        %s208 = scalar_lea.vmem %s0, %s207
        %p209 = scmp.lt.s32.totalorder %s19, 1
        %s210 = scalar_select %p209, %s19, 1
        %s211 = smul.addr %s210, 8
        %s212 = scalar_lea.vmem %s3, %s211
        %p213 = scmp.lt.s32.totalorder %s19, 1
        %s214 = scalar_select %p213, %s19, 1
        %s215 = smul.addr %s214, 8
        %s216 = scalar_lea.vmem %s4, %s215
        %v217 = vld [vmem:[%s208] sm:$0xff]
        %v218 = vld [vmem:[%s208 + $0x8] sm:$0xf]
        %vm219 = vcmask 146432
        %220 = vst.msk [vmem:[#allocation2] sm:$0xff] %vm219, %v217
        %vm221 = vcmask 142336
        %222 = vst.msk [vmem:[#allocation2 + $0x18] sm:$0xf] %vm221, %v218
        %v223 = vld [vmem:[%s208] sm:$0xff]
        %v224 = vld [vmem:[%s208 + $0x8] sm:$0xf]
        %vm227 = vcmask 1043456
        %v228 = vrot.slane %v223, 4
        %v229 = vrot.slane %v224, 4
        %v230 = vsel %vm227, %v228, %v229
        %231 = vrot.lane.b32.xlu0 %v228, 127
        %v232 = vpop.permute.xlu0 %231
        %233 = vrot.lane.b32.xlu0 %v230, 127
        %v234 = vpop.permute.xlu0 %233
        %vm237 = vcmask 146436
        %238 = vst.msk [vmem:[#allocation2 + $0x18] sm:$0xf0] %vm237, %v232
        %239 = vst.msk [vmem:[#allocation2 + $0x30] sm:$0xff] %vm219, %v234
        %v240 = vld [vmem:[%s208] sm:$0xff]
        %v241 = vld [vmem:[%s208 + $0x8] sm:$0xf]
        %244 = vrot.lane.b32.xlu0 %v240, 126
        %v245 = vpop.permute.xlu0 %244
        %246 = vrot.lane.b32.xlu0 %v241, 126
        %v247 = vpop.permute.xlu0 %246
        %250 = vst.msk [vmem:[#allocation2 + $0x48] sm:$0xff] %vm219, %v245
        %251 = vst.msk [vmem:[#allocation2 + $0x60] sm:$0xf] %vm221, %v247
        %v252 = vld [vmem:[%s208 + $0x4] sm:$0xff]
        %v253 = vld [vmem:[%s208 + $0xc] sm:$0xf]
        %256 = vrot.lane.b32.xlu0 %v252, 18
        %v257 = vpop.permute.xlu0 %256
        %258 = vrot.lane.b32.xlu0 %v253, 18
        %v259 = vpop.permute.xlu0 %258
        %vm262 = vcmask 294032
        %263 = vst.msk [vmem:[#allocation2] sm:$0xff] %vm262, %v257
        %vm264 = vcmask 289936
        %265 = vst.msk [vmem:[#allocation2 + $0x18] sm:$0xf] %vm264, %v259
        %v266 = vld [vmem:[%s208 + $0x4] sm:$0xff]
        %v267 = vld [vmem:[%s208 + $0xc] sm:$0xf]
        %v270 = vrot.slane %v266, 4
        %v271 = vrot.slane %v267, 4
        %v272 = vsel %vm227, %v270, %v271
        %273 = vrot.lane.b32.xlu0 %v270, 17
        %v274 = vpop.permute.xlu0 %273
        %275 = vrot.lane.b32.xlu0 %v272, 17
        %v276 = vpop.permute.xlu0 %275
        %vm279 = vcmask 294036
        %280 = vst.msk [vmem:[#allocation2 + $0x18] sm:$0xf0] %vm279, %v274
        %281 = vst.msk [vmem:[#allocation2 + $0x30] sm:$0xff] %vm262, %v276
        %v282 = vld [vmem:[%s208 + $0x4] sm:$0xff]
        %v283 = vld [vmem:[%s208 + $0xc] sm:$0xf]
        %286 = vrot.lane.b32.xlu0 %v282, 16
        %v287 = vpop.permute.xlu0 %286
        %288 = vrot.lane.b32.xlu0 %v283, 16
        %v289 = vpop.permute.xlu0 %288
        %292 = vst.msk [vmem:[#allocation2 + $0x48] sm:$0xff] %vm262, %v287
        %293 = vst.msk [vmem:[#allocation2 + $0x60] sm:$0xf] %vm264, %v289
        %v294 = vld [vmem:[%s208 + $0x8] sm:$0xff]
        %v295 = vld [vmem:[%s208 + $0x10] sm:$0xf]
        %298 = vrot.lane.b32.xlu0 %v294, 36
        %v299 = vpop.permute.xlu0 %298
        %300 = vrot.lane.b32.xlu0 %v295, 36
        %v301 = vpop.permute.xlu0 %300
        %vm304 = vcmask 441632
        %305 = vst.msk [vmem:[#allocation2] sm:$0xff] %vm304, %v299
        %vm306 = vcmask 437536
        %307 = vst.msk [vmem:[#allocation2 + $0x18] sm:$0xf] %vm306, %v301
        %v308 = vld [vmem:[%s208 + $0x8] sm:$0xff]
        %v309 = vld [vmem:[%s208 + $0x10] sm:$0xf]
        %v312 = vrot.slane %v308, 4
        %v313 = vrot.slane %v309, 4
        %v314 = vsel %vm227, %v312, %v313
        %315 = vrot.lane.b32.xlu0 %v312, 35
        %v316 = vpop.permute.xlu0 %315
        %317 = vrot.lane.b32.xlu0 %v314, 35
        %v318 = vpop.permute.xlu0 %317
        %vm321 = vcmask 441636
        %322 = vst.msk [vmem:[#allocation2 + $0x18] sm:$0xf0] %vm321, %v316
        %323 = vst.msk [vmem:[#allocation2 + $0x30] sm:$0xff] %vm304, %v318
        %v324 = vld [vmem:[%s208 + $0x8] sm:$0xff]
        %v325 = vld [vmem:[%s208 + $0x10] sm:$0xf]
        %328 = vrot.lane.b32.xlu0 %v324, 34
        %v329 = vpop.permute.xlu0 %328
        %330 = vrot.lane.b32.xlu0 %v325, 34
        %v331 = vpop.permute.xlu0 %330
        %334 = vst.msk [vmem:[#allocation2 + $0x48] sm:$0xff] %vm304, %v329
        %335 = vst.msk [vmem:[#allocation2 + $0x60] sm:$0xf] %vm306, %v331
        %v336 = vld [vmem:[%s208 + $0xc] sm:$0xff]
        %v337 = vld [vmem:[%s208 + $0x14] sm:$0xf]
        %340 = vrot.lane.b32.xlu0 %v336, 54
        %v341 = vpop.permute.xlu0 %340
        %342 = vrot.lane.b32.xlu0 %v337, 54
        %v343 = vpop.permute.xlu0 %342
        %vm346 = vcmask 589232
        %347 = vst.msk [vmem:[#allocation2] sm:$0xff] %vm346, %v341
        %vm348 = vcmask 585136
        %349 = vst.msk [vmem:[#allocation2 + $0x18] sm:$0xf] %vm348, %v343
        %v350 = vld [vmem:[%s208 + $0xc] sm:$0xff]
        %v351 = vld [vmem:[%s208 + $0x14] sm:$0xf]
        %v354 = vrot.slane %v350, 4
        %v355 = vrot.slane %v351, 4
        %v356 = vsel %vm227, %v354, %v355
        %357 = vrot.lane.b32.xlu0 %v354, 53
        %v358 = vpop.permute.xlu0 %357
        %359 = vrot.lane.b32.xlu0 %v356, 53
        %v360 = vpop.permute.xlu0 %359
        %vm363 = vcmask 589236
        %364 = vst.msk [vmem:[#allocation2 + $0x18] sm:$0xf0] %vm363, %v358
        %365 = vst.msk [vmem:[#allocation2 + $0x30] sm:$0xff] %vm346, %v360
        %v366 = vld [vmem:[%s208 + $0xc] sm:$0xff]
        %v367 = vld [vmem:[%s208 + $0x14] sm:$0xf]
        %370 = vrot.lane.b32.xlu0 %v366, 52
        %v371 = vpop.permute.xlu0 %370
        %372 = vrot.lane.b32.xlu0 %v367, 52
        %v373 = vpop.permute.xlu0 %372
        %376 = vst.msk [vmem:[#allocation2 + $0x48] sm:$0xff] %vm346, %v371
        %377 = vst.msk [vmem:[#allocation2 + $0x60] sm:$0xf] %vm348, %v373
        %v378 = vld [vmem:[%s208 + $0x10] sm:$0xff]
        %v379 = vld [vmem:[%s208 + $0x18] sm:$0xf]
        %382 = vrot.lane.b32.xlu0 %v378, 72
        %v383 = vpop.permute.xlu0 %382
        %384 = vrot.lane.b32.xlu0 %v379, 72
        %v385 = vpop.permute.xlu0 %384
        %vm388 = vcmask 736832
        %389 = vst.msk [vmem:[#allocation2] sm:$0xff] %vm388, %v383
        %vm390 = vcmask 732736
        %391 = vst.msk [vmem:[#allocation2 + $0x18] sm:$0xf] %vm390, %v385
        %v392 = vld [vmem:[%s208 + $0x10] sm:$0xff]
        %v393 = vld [vmem:[%s208 + $0x18] sm:$0xf]
        %v396 = vrot.slane %v392, 4
        %v397 = vrot.slane %v393, 4
        %v398 = vsel %vm227, %v396, %v397
        %399 = vrot.lane.b32.xlu0 %v396, 71
        %v400 = vpop.permute.xlu0 %399
        %401 = vrot.lane.b32.xlu0 %v398, 71
        %v402 = vpop.permute.xlu0 %401
        %vm405 = vcmask 736836
        %406 = vst.msk [vmem:[#allocation2 + $0x18] sm:$0xf0] %vm405, %v400
        %407 = vst.msk [vmem:[#allocation2 + $0x30] sm:$0xff] %vm388, %v402
        %v408 = vld [vmem:[%s208 + $0x10] sm:$0xff]
        %v409 = vld [vmem:[%s208 + $0x18] sm:$0xf]
        %412 = vrot.lane.b32.xlu0 %v408, 70
        %v413 = vpop.permute.xlu0 %412
        %414 = vrot.lane.b32.xlu0 %v409, 70
        %v415 = vpop.permute.xlu0 %414
        %418 = vst.msk [vmem:[#allocation2 + $0x48] sm:$0xff] %vm388, %v413
        %419 = vst.msk [vmem:[#allocation2 + $0x60] sm:$0xf] %vm390, %v415
        %v420 = vld [vmem:[%s208 + $0x14] sm:$0xff]
        %v421 = vld [vmem:[%s208 + $0x1c] sm:$0xf]
        %424 = vrot.lane.b32.xlu0 %v420, 90
        %v425 = vpop.permute.xlu0 %424
        %426 = vrot.lane.b32.xlu0 %v421, 90
        %v427 = vpop.permute.xlu0 %426
        %vm430 = vcmask 884432
        %431 = vst.msk [vmem:[#allocation2] sm:$0xff] %vm430, %v425
        %vm432 = vcmask 880336
        %433 = vst.msk [vmem:[#allocation2 + $0x18] sm:$0xf] %vm432, %v427
        %v434 = vld [vmem:[%s208 + $0x14] sm:$0xff]
        %v435 = vld [vmem:[%s208 + $0x1c] sm:$0xf]
        %v438 = vrot.slane %v434, 4
        %v439 = vrot.slane %v435, 4
        %v440 = vsel %vm227, %v438, %v439
        %441 = vrot.lane.b32.xlu0 %v438, 89
        %v442 = vpop.permute.xlu0 %441
        %443 = vrot.lane.b32.xlu0 %v440, 89
        %v444 = vpop.permute.xlu0 %443
        %vm447 = vcmask 884436
        %448 = vst.msk [vmem:[#allocation2 + $0x18] sm:$0xf0] %vm447, %v442
        %449 = vst.msk [vmem:[#allocation2 + $0x30] sm:$0xff] %vm430, %v444
        %v450 = vld [vmem:[%s208 + $0x14] sm:$0xff]
        %v451 = vld [vmem:[%s208 + $0x1c] sm:$0xf]
        %454 = vrot.lane.b32.xlu0 %v450, 88
        %v455 = vpop.permute.xlu0 %454
        %456 = vrot.lane.b32.xlu0 %v451, 88
        %v457 = vpop.permute.xlu0 %456
        %460 = vst.msk [vmem:[#allocation2 + $0x48] sm:$0xff] %vm430, %v455
        %461 = vst.msk [vmem:[#allocation2 + $0x60] sm:$0xf] %vm432, %v457
        %v462 = vld [vmem:[%s208 + $0x18] sm:$0xff]
        %v463 = vld [vmem:[%s208 + $0x20] sm:$0xf]
        %466 = vrot.lane.b32.xlu0 %v462, 108
        %v467 = vpop.permute.xlu0 %466
        %468 = vrot.lane.b32.xlu0 %v463, 108
        %v469 = vpop.permute.xlu0 %468
        %vm472 = vcmask 1032032
        %473 = vst.msk [vmem:[#allocation2] sm:$0xff] %vm472, %v467
        %vm474 = vcmask 1027936
        %475 = vst.msk [vmem:[#allocation2 + $0x18] sm:$0xf] %vm474, %v469
        %v476 = vld [vmem:[%s208 + $0x18] sm:$0xff]
        %v477 = vld [vmem:[%s208 + $0x20] sm:$0xf]
        %v480 = vrot.slane %v476, 4
        %v481 = vrot.slane %v477, 4
        %v482 = vsel %vm227, %v480, %v481
        %483 = vrot.lane.b32.xlu0 %v480, 107
        %v484 = vpop.permute.xlu0 %483
        %485 = vrot.lane.b32.xlu0 %v482, 107
        %v486 = vpop.permute.xlu0 %485
        %vm489 = vcmask 1032036
        %490 = vst.msk [vmem:[#allocation2 + $0x18] sm:$0xf0] %vm489, %v484
        %491 = vst.msk [vmem:[#allocation2 + $0x30] sm:$0xff] %vm472, %v486
        %v492 = vld [vmem:[%s208 + $0x18] sm:$0xff]
        %v493 = vld [vmem:[%s208 + $0x20] sm:$0xf]
        %496 = vrot.lane.b32.xlu0 %v492, 106
        %v497 = vpop.permute.xlu0 %496
        %498 = vrot.lane.b32.xlu0 %v493, 106
        %v499 = vpop.permute.xlu0 %498
        %502 = vst.msk [vmem:[#allocation2 + $0x48] sm:$0xff] %vm472, %v497
        %503 = vst.msk [vmem:[#allocation2 + $0x60] sm:$0xf] %vm474, %v499
        %v504 = vld [vmem:[%s208 + $0x1c] sm:$0xff]
        %v505 = vld [vmem:[%s208 + $0x24] sm:$0xf]
        %508 = vrot.lane.b32.xlu0 %v504, 126
        %v509 = vpop.permute.xlu0 %508
        %510 = vrot.lane.b32.xlu0 %v505, 126
        %v511 = vpop.permute.xlu0 %510
        %vm514 = vcmask 1048560
        %515 = vst.msk [vmem:[#allocation2] sm:$0xff] %vm514, %v509
        %vm516 = vcmask 130048
        %517 = vst.msk [vmem:[#allocation2 + $0x8] sm:$0xff] %vm516, %v509
        %vm518 = vcmask 1044464
        %519 = vst.msk [vmem:[#allocation2 + $0x18] sm:$0xf] %vm518, %v511
        %vm520 = vcmask 125952
        %521 = vst.msk [vmem:[#allocation2 + $0x20] sm:$0xf] %vm520, %v511
        %v522 = vld [vmem:[%s208 + $0x1c] sm:$0xff]
        %v523 = vld [vmem:[%s208 + $0x24] sm:$0xf]
        %v526 = vrot.slane %v522, 4
        %v527 = vrot.slane %v523, 4
        %v528 = vsel %vm227, %v526, %v527
        %529 = vrot.lane.b32.xlu0 %v526, 125
        %v530 = vpop.permute.xlu0 %529
        %531 = vrot.lane.b32.xlu0 %v528, 125
        %v532 = vpop.permute.xlu0 %531
        %vm535 = vcmask 1048564
        %536 = vst.msk [vmem:[#allocation2 + $0x18] sm:$0xf0] %vm535, %v530
        %vm537 = vcmask 130052
        %538 = vst.msk [vmem:[#allocation2 + $0x20] sm:$0xf0] %vm537, %v530
        %539 = vst.msk [vmem:[#allocation2 + $0x30] sm:$0xff] %vm514, %v532
        %540 = vst.msk [vmem:[#allocation2 + $0x38] sm:$0xff] %vm516, %v532
        %v541 = vld [vmem:[%s208 + $0x1c] sm:$0xff]
        %v542 = vld [vmem:[%s208 + $0x24] sm:$0xf]
        %545 = vrot.lane.b32.xlu0 %v541, 124
        %v546 = vpop.permute.xlu0 %545
        %547 = vrot.lane.b32.xlu0 %v542, 124
        %v548 = vpop.permute.xlu0 %547
        %551 = vst.msk [vmem:[#allocation2 + $0x48] sm:$0xff] %vm514, %v546
        %552 = vst.msk [vmem:[#allocation2 + $0x50] sm:$0xff] %vm516, %v546
        %553 = vst.msk [vmem:[#allocation2 + $0x60] sm:$0xf] %vm518, %v548
        %554 = vst.msk [vmem:[#allocation2 + $0x68] sm:$0xf] %vm520, %v548
        %v555 = vld [vmem:[%s208 + $0x20] sm:$0xff]
        %v556 = vld [vmem:[%s208 + $0x28] sm:$0xf]
        %559 = vrot.lane.b32.xlu0 %v555, 16
        %v560 = vpop.permute.xlu0 %559
        %561 = vrot.lane.b32.xlu0 %v556, 16
        %v562 = vpop.permute.xlu0 %561
        %vm565 = vcmask 277632
        %566 = vst.msk [vmem:[#allocation2 + $0x8] sm:$0xff] %vm565, %v560
        %vm567 = vcmask 273536
        %568 = vst.msk [vmem:[#allocation2 + $0x20] sm:$0xf] %vm567, %v562
        %v569 = vld [vmem:[%s208 + $0x20] sm:$0xff]
        %v570 = vld [vmem:[%s208 + $0x28] sm:$0xf]
        %v573 = vrot.slane %v569, 4
        %v574 = vrot.slane %v570, 4
        %v575 = vsel %vm227, %v573, %v574
        %576 = vrot.lane.b32.xlu0 %v573, 15
        %v577 = vpop.permute.xlu0 %576
        %578 = vrot.lane.b32.xlu0 %v575, 15
        %v579 = vpop.permute.xlu0 %578
        %vm582 = vcmask 277636
        %583 = vst.msk [vmem:[#allocation2 + $0x20] sm:$0xf0] %vm582, %v577
        %584 = vst.msk [vmem:[#allocation2 + $0x38] sm:$0xff] %vm565, %v579
        %v585 = vld [vmem:[%s208 + $0x20] sm:$0xff]
        %v586 = vld [vmem:[%s208 + $0x28] sm:$0xf]
        %589 = vrot.lane.b32.xlu0 %v585, 14
        %v590 = vpop.permute.xlu0 %589
        %591 = vrot.lane.b32.xlu0 %v586, 14
        %v592 = vpop.permute.xlu0 %591
        %595 = vst.msk [vmem:[#allocation2 + $0x50] sm:$0xff] %vm565, %v590
        %596 = vst.msk [vmem:[#allocation2 + $0x68] sm:$0xf] %vm567, %v592
        %v597 = vld [vmem:[%s208 + $0x24] sm:$0xff]
        %v598 = vld [vmem:[%s208 + $0x2c] sm:$0xf]
        %601 = vrot.lane.b32.xlu0 %v597, 34
        %v602 = vpop.permute.xlu0 %601
        %603 = vrot.lane.b32.xlu0 %v598, 34
        %v604 = vpop.permute.xlu0 %603
        %vm607 = vcmask 425232
        %608 = vst.msk [vmem:[#allocation2 + $0x8] sm:$0xff] %vm607, %v602
        %vm609 = vcmask 421136
        %610 = vst.msk [vmem:[#allocation2 + $0x20] sm:$0xf] %vm609, %v604
        %v611 = vld [vmem:[%s208 + $0x24] sm:$0xff]
        %v612 = vld [vmem:[%s208 + $0x2c] sm:$0xf]
        %v615 = vrot.slane %v611, 4
        %v616 = vrot.slane %v612, 4
        %v617 = vsel %vm227, %v615, %v616
        %618 = vrot.lane.b32.xlu0 %v615, 33
        %v619 = vpop.permute.xlu0 %618
        %620 = vrot.lane.b32.xlu0 %v617, 33
        %v621 = vpop.permute.xlu0 %620
        %vm624 = vcmask 425236
        %625 = vst.msk [vmem:[#allocation2 + $0x20] sm:$0xf0] %vm624, %v619
        %626 = vst.msk [vmem:[#allocation2 + $0x38] sm:$0xff] %vm607, %v621
        %v627 = vld [vmem:[%s208 + $0x24] sm:$0xff]
        %v628 = vld [vmem:[%s208 + $0x2c] sm:$0xf]
        %631 = vrot.lane.b32.xlu0 %v627, 32
        %v632 = vpop.permute.xlu0 %631
        %633 = vrot.lane.b32.xlu0 %v628, 32
        %v634 = vpop.permute.xlu0 %633
        %637 = vst.msk [vmem:[#allocation2 + $0x50] sm:$0xff] %vm607, %v632
        %638 = vst.msk [vmem:[#allocation2 + $0x68] sm:$0xf] %vm609, %v634
        %v639 = vld [vmem:[%s208 + $0x28] sm:$0xff]
        %v640 = vld [vmem:[%s208 + $0x30] sm:$0xf]
        %643 = vrot.lane.b32.xlu0 %v639, 52
        %v644 = vpop.permute.xlu0 %643
        %645 = vrot.lane.b32.xlu0 %v640, 52
        %v646 = vpop.permute.xlu0 %645
        %vm649 = vcmask 572832
        %650 = vst.msk [vmem:[#allocation2 + $0x8] sm:$0xff] %vm649, %v644
        %vm651 = vcmask 568736
        %652 = vst.msk [vmem:[#allocation2 + $0x20] sm:$0xf] %vm651, %v646
        %v653 = vld [vmem:[%s208 + $0x28] sm:$0xff]
        %v654 = vld [vmem:[%s208 + $0x30] sm:$0xf]
        %v657 = vrot.slane %v653, 4
        %v658 = vrot.slane %v654, 4
        %v659 = vsel %vm227, %v657, %v658
        %660 = vrot.lane.b32.xlu0 %v657, 51
        %v661 = vpop.permute.xlu0 %660
        %662 = vrot.lane.b32.xlu0 %v659, 51
        %v663 = vpop.permute.xlu0 %662
        %vm666 = vcmask 572836
        %667 = vst.msk [vmem:[#allocation2 + $0x20] sm:$0xf0] %vm666, %v661
        %668 = vst.msk [vmem:[#allocation2 + $0x38] sm:$0xff] %vm649, %v663
        %v669 = vld [vmem:[%s208 + $0x28] sm:$0xff]
        %v670 = vld [vmem:[%s208 + $0x30] sm:$0xf]
        %673 = vrot.lane.b32.xlu0 %v669, 50
        %v674 = vpop.permute.xlu0 %673
        %675 = vrot.lane.b32.xlu0 %v670, 50
        %v676 = vpop.permute.xlu0 %675
        %679 = vst.msk [vmem:[#allocation2 + $0x50] sm:$0xff] %vm649, %v674
        %680 = vst.msk [vmem:[#allocation2 + $0x68] sm:$0xf] %vm651, %v676
        %v681 = vld [vmem:[%s208 + $0x2c] sm:$0xff]
        %v682 = vld [vmem:[%s208 + $0x34] sm:$0xf]
        %685 = vrot.lane.b32.xlu0 %v681, 70
        %v686 = vpop.permute.xlu0 %685
        %687 = vrot.lane.b32.xlu0 %v682, 70
        %v688 = vpop.permute.xlu0 %687
        %vm691 = vcmask 720432
        %692 = vst.msk [vmem:[#allocation2 + $0x8] sm:$0xff] %vm691, %v686
        %vm693 = vcmask 716336
        %694 = vst.msk [vmem:[#allocation2 + $0x20] sm:$0xf] %vm693, %v688
        %v695 = vld [vmem:[%s208 + $0x2c] sm:$0xff]
        %v696 = vld [vmem:[%s208 + $0x34] sm:$0xf]
        %v699 = vrot.slane %v695, 4
        %v700 = vrot.slane %v696, 4
        %v701 = vsel %vm227, %v699, %v700
        %702 = vrot.lane.b32.xlu0 %v699, 69
        %v703 = vpop.permute.xlu0 %702
        %704 = vrot.lane.b32.xlu0 %v701, 69
        %v705 = vpop.permute.xlu0 %704
        %vm708 = vcmask 720436
        %709 = vst.msk [vmem:[#allocation2 + $0x20] sm:$0xf0] %vm708, %v703
        %710 = vst.msk [vmem:[#allocation2 + $0x38] sm:$0xff] %vm691, %v705
        %v711 = vld [vmem:[%s208 + $0x2c] sm:$0xff]
        %v712 = vld [vmem:[%s208 + $0x34] sm:$0xf]
        %715 = vrot.lane.b32.xlu0 %v711, 68
        %v716 = vpop.permute.xlu0 %715
        %717 = vrot.lane.b32.xlu0 %v712, 68
        %v718 = vpop.permute.xlu0 %717
        %721 = vst.msk [vmem:[#allocation2 + $0x50] sm:$0xff] %vm691, %v716
        %722 = vst.msk [vmem:[#allocation2 + $0x68] sm:$0xf] %vm693, %v718
        %v723 = vld [vmem:[%s208 + $0x30] sm:$0xff]
        %v724 = vld [vmem:[%s208 + $0x38] sm:$0xf]
        %727 = vrot.lane.b32.xlu0 %v723, 88
        %v728 = vpop.permute.xlu0 %727
        %729 = vrot.lane.b32.xlu0 %v724, 88
        %v730 = vpop.permute.xlu0 %729
        %vm733 = vcmask 868032
        %734 = vst.msk [vmem:[#allocation2 + $0x8] sm:$0xff] %vm733, %v728
        %vm735 = vcmask 863936
        %736 = vst.msk [vmem:[#allocation2 + $0x20] sm:$0xf] %vm735, %v730
        %v737 = vld [vmem:[%s208 + $0x30] sm:$0xff]
        %v738 = vld [vmem:[%s208 + $0x38] sm:$0xf]
        %v741 = vrot.slane %v737, 4
        %v742 = vrot.slane %v738, 4
        %v743 = vsel %vm227, %v741, %v742
        %744 = vrot.lane.b32.xlu0 %v741, 87
        %v745 = vpop.permute.xlu0 %744
        %746 = vrot.lane.b32.xlu0 %v743, 87
        %v747 = vpop.permute.xlu0 %746
        %vm750 = vcmask 868036
        %751 = vst.msk [vmem:[#allocation2 + $0x20] sm:$0xf0] %vm750, %v745
        %752 = vst.msk [vmem:[#allocation2 + $0x38] sm:$0xff] %vm733, %v747
        %v753 = vld [vmem:[%s208 + $0x30] sm:$0xff]
        %v754 = vld [vmem:[%s208 + $0x38] sm:$0xf]
        %757 = vrot.lane.b32.xlu0 %v753, 86
        %v758 = vpop.permute.xlu0 %757
        %759 = vrot.lane.b32.xlu0 %v754, 86
        %v760 = vpop.permute.xlu0 %759
        %763 = vst.msk [vmem:[#allocation2 + $0x50] sm:$0xff] %vm733, %v758
        %764 = vst.msk [vmem:[#allocation2 + $0x68] sm:$0xf] %vm735, %v760
        %v765 = vld [vmem:[%s208 + $0x34] sm:$0xff]
        %v766 = vld [vmem:[%s208 + $0x3c] sm:$0xf]
        %769 = vrot.lane.b32.xlu0 %v765, 106
        %v770 = vpop.permute.xlu0 %769
        %771 = vrot.lane.b32.xlu0 %v766, 106
        %v772 = vpop.permute.xlu0 %771
        %vm775 = vcmask 1015632
        %776 = vst.msk [vmem:[#allocation2 + $0x8] sm:$0xff] %vm775, %v770
        %vm777 = vcmask 1011536
        %778 = vst.msk [vmem:[#allocation2 + $0x20] sm:$0xf] %vm777, %v772
        %v779 = vld [vmem:[%s208 + $0x34] sm:$0xff]
        %v780 = vld [vmem:[%s208 + $0x3c] sm:$0xf]
        %v783 = vrot.slane %v779, 4
        %v784 = vrot.slane %v780, 4
        %v785 = vsel %vm227, %v783, %v784
        %786 = vrot.lane.b32.xlu0 %v783, 105
        %v787 = vpop.permute.xlu0 %786
        %788 = vrot.lane.b32.xlu0 %v785, 105
        %v789 = vpop.permute.xlu0 %788
        %vm792 = vcmask 1015636
        %793 = vst.msk [vmem:[#allocation2 + $0x20] sm:$0xf0] %vm792, %v787
        %794 = vst.msk [vmem:[#allocation2 + $0x38] sm:$0xff] %vm775, %v789
        %v795 = vld [vmem:[%s208 + $0x34] sm:$0xff]
        %v796 = vld [vmem:[%s208 + $0x3c] sm:$0xf]
        %799 = vrot.lane.b32.xlu0 %v795, 104
        %v800 = vpop.permute.xlu0 %799
        %801 = vrot.lane.b32.xlu0 %v796, 104
        %v802 = vpop.permute.xlu0 %801
        %805 = vst.msk [vmem:[#allocation2 + $0x50] sm:$0xff] %vm775, %v800
        %806 = vst.msk [vmem:[#allocation2 + $0x68] sm:$0xf] %vm777, %v802
        %v807 = vld [vmem:[%s208 + $0x38] sm:$0xff]
        %v808 = vld [vmem:[%s208 + $0x40] sm:$0xf]
        %811 = vrot.lane.b32.xlu0 %v807, 124
        %v812 = vpop.permute.xlu0 %811
        %813 = vrot.lane.b32.xlu0 %v808, 124
        %v814 = vpop.permute.xlu0 %813
        %vm817 = vcmask 1048544
        %818 = vst.msk [vmem:[#allocation2 + $0x8] sm:$0xff] %vm817, %v812
        %vm819 = vcmask 113664
        %820 = vst.msk [vmem:[#allocation2 + $0x10] sm:$0xff] %vm819, %v812
        %vm821 = vcmask 1044448
        %822 = vst.msk [vmem:[#allocation2 + $0x20] sm:$0xf] %vm821, %v814
        %vm823 = vcmask 109568
        %824 = vst.msk [vmem:[#allocation2 + $0x28] sm:$0xf] %vm823, %v814
        %v825 = vld [vmem:[%s208 + $0x38] sm:$0xff]
        %v826 = vld [vmem:[%s208 + $0x40] sm:$0xf]
        %v829 = vrot.slane %v825, 4
        %v830 = vrot.slane %v826, 4
        %v831 = vsel %vm227, %v829, %v830
        %832 = vrot.lane.b32.xlu0 %v829, 123
        %v833 = vpop.permute.xlu0 %832
        %834 = vrot.lane.b32.xlu0 %v831, 123
        %v835 = vpop.permute.xlu0 %834
        %vm838 = vcmask 1048548
        %839 = vst.msk [vmem:[#allocation2 + $0x20] sm:$0xf0] %vm838, %v833
        %vm840 = vcmask 113668
        %841 = vst.msk [vmem:[#allocation2 + $0x28] sm:$0xf0] %vm840, %v833
        %842 = vst.msk [vmem:[#allocation2 + $0x38] sm:$0xff] %vm817, %v835
        %843 = vst.msk [vmem:[#allocation2 + $0x40] sm:$0xff] %vm819, %v835
        %v844 = vld [vmem:[%s208 + $0x38] sm:$0xff]
        %v845 = vld [vmem:[%s208 + $0x40] sm:$0xf]
        %848 = vrot.lane.b32.xlu0 %v844, 122
        %v849 = vpop.permute.xlu0 %848
        %850 = vrot.lane.b32.xlu0 %v845, 122
        %v851 = vpop.permute.xlu0 %850
        %854 = vst.msk [vmem:[#allocation2 + $0x50] sm:$0xff] %vm817, %v849
        %855 = vst.msk [vmem:[#allocation2 + $0x58] sm:$0xff] %vm819, %v849
        %856 = vst.msk [vmem:[#allocation2 + $0x68] sm:$0xf] %vm821, %v851
        %857 = vst.msk [vmem:[#allocation2 + $0x70] sm:$0xf] %vm823, %v851
        %v858 = vld [vmem:[%s208 + $0x3c] sm:$0xff]
        %v859 = vld [vmem:[%s208 + $0x44] sm:$0xf]
        %862 = vrot.lane.b32.xlu0 %v858, 14
        %v863 = vpop.permute.xlu0 %862
        %864 = vrot.lane.b32.xlu0 %v859, 14
        %v865 = vpop.permute.xlu0 %864
        %vm868 = vcmask 261232
        %869 = vst.msk [vmem:[#allocation2 + $0x10] sm:$0xff] %vm868, %v863
        %vm870 = vcmask 257136
        %871 = vst.msk [vmem:[#allocation2 + $0x28] sm:$0xf] %vm870, %v865
        %v872 = vld [vmem:[%s208 + $0x3c] sm:$0xff]
        %v873 = vld [vmem:[%s208 + $0x44] sm:$0xf]
        %v876 = vrot.slane %v872, 4
        %v877 = vrot.slane %v873, 4
        %v878 = vsel %vm227, %v876, %v877
        %879 = vrot.lane.b32.xlu0 %v876, 13
        %v880 = vpop.permute.xlu0 %879
        %881 = vrot.lane.b32.xlu0 %v878, 13
        %v882 = vpop.permute.xlu0 %881
        %vm885 = vcmask 261236
        %886 = vst.msk [vmem:[#allocation2 + $0x28] sm:$0xf0] %vm885, %v880
        %887 = vst.msk [vmem:[#allocation2 + $0x40] sm:$0xff] %vm868, %v882
        %v888 = vld [vmem:[%s208 + $0x3c] sm:$0xff]
        %v889 = vld [vmem:[%s208 + $0x44] sm:$0xf]
        %892 = vrot.lane.b32.xlu0 %v888, 12
        %v893 = vpop.permute.xlu0 %892
        %894 = vrot.lane.b32.xlu0 %v889, 12
        %v895 = vpop.permute.xlu0 %894
        %898 = vst.msk [vmem:[#allocation2 + $0x58] sm:$0xff] %vm868, %v893
        %899 = vst.msk [vmem:[#allocation2 + $0x70] sm:$0xf] %vm870, %v895
        %v900 = vld [vmem:[%s208 + $0x40] sm:$0xff]
        %v901 = vld [vmem:[%s208 + $0x48] sm:$0xf]
        %904 = vrot.lane.b32.xlu0 %v900, 32
        %v905 = vpop.permute.xlu0 %904
        %906 = vrot.lane.b32.xlu0 %v901, 32
        %v907 = vpop.permute.xlu0 %906
        %vm910 = vcmask 408832
        %911 = vst.msk [vmem:[#allocation2 + $0x10] sm:$0xff] %vm910, %v905
        %vm912 = vcmask 404736
        %913 = vst.msk [vmem:[#allocation2 + $0x28] sm:$0xf] %vm912, %v907
        %v914 = vld [vmem:[%s208 + $0x40] sm:$0xff]
        %v915 = vld [vmem:[%s208 + $0x48] sm:$0xf]
        %v918 = vrot.slane %v914, 4
        %v919 = vrot.slane %v915, 4
        %v920 = vsel %vm227, %v918, %v919
        %921 = vrot.lane.b32.xlu0 %v918, 31
        %v922 = vpop.permute.xlu0 %921
        %923 = vrot.lane.b32.xlu0 %v920, 31
        %v924 = vpop.permute.xlu0 %923
        %vm927 = vcmask 408836
        %928 = vst.msk [vmem:[#allocation2 + $0x28] sm:$0xf0] %vm927, %v922
        %929 = vst.msk [vmem:[#allocation2 + $0x40] sm:$0xff] %vm910, %v924
        %v930 = vld [vmem:[%s208 + $0x40] sm:$0xff]
        %v931 = vld [vmem:[%s208 + $0x48] sm:$0xf]
        %934 = vrot.lane.b32.xlu0 %v930, 30
        %v935 = vpop.permute.xlu0 %934
        %936 = vrot.lane.b32.xlu0 %v931, 30
        %v937 = vpop.permute.xlu0 %936
        %940 = vst.msk [vmem:[#allocation2 + $0x58] sm:$0xff] %vm910, %v935
        %941 = vst.msk [vmem:[#allocation2 + $0x70] sm:$0xf] %vm912, %v937
        %v942 = vld [vmem:[%s208 + $0x44] sm:$0xff]
        %v943 = vld [vmem:[%s208 + $0x4c] sm:$0xf]
        %946 = vrot.lane.b32.xlu0 %v942, 50
        %v947 = vpop.permute.xlu0 %946
        %948 = vrot.lane.b32.xlu0 %v943, 50
        %v949 = vpop.permute.xlu0 %948
        %vm952 = vcmask 556432
        %953 = vst.msk [vmem:[#allocation2 + $0x10] sm:$0xff] %vm952, %v947
        %vm954 = vcmask 552336
        %955 = vst.msk [vmem:[#allocation2 + $0x28] sm:$0xf] %vm954, %v949
        %v956 = vld [vmem:[%s208 + $0x44] sm:$0xff]
        %v957 = vld [vmem:[%s208 + $0x4c] sm:$0xf]
        %v960 = vrot.slane %v956, 4
        %v961 = vrot.slane %v957, 4
        %v962 = vsel %vm227, %v960, %v961
        %963 = vrot.lane.b32.xlu0 %v960, 49
        %v964 = vpop.permute.xlu0 %963
        %965 = vrot.lane.b32.xlu0 %v962, 49
        %v966 = vpop.permute.xlu0 %965
        %vm969 = vcmask 556436
        %970 = vst.msk [vmem:[#allocation2 + $0x28] sm:$0xf0] %vm969, %v964
        %971 = vst.msk [vmem:[#allocation2 + $0x40] sm:$0xff] %vm952, %v966
        %v972 = vld [vmem:[%s208 + $0x44] sm:$0xff]
        %v973 = vld [vmem:[%s208 + $0x4c] sm:$0xf]
        %976 = vrot.lane.b32.xlu0 %v972, 48
        %v977 = vpop.permute.xlu0 %976
        %978 = vrot.lane.b32.xlu0 %v973, 48
        %v979 = vpop.permute.xlu0 %978
        %982 = vst.msk [vmem:[#allocation2 + $0x58] sm:$0xff] %vm952, %v977
        %983 = vst.msk [vmem:[#allocation2 + $0x70] sm:$0xf] %vm954, %v979
        %v984 = vld [vmem:[%s1] sm:$0xff]
        %v985 = vld [vmem:[#allocation2] sm:$0xff]
        %v986 = vld [vmem:[#allocation2 + $0x8] sm:$0xff]
        %v987 = vld [vmem:[#allocation2 + $0x10] sm:$0xff]
        %v988 = vld [vmem:[#allocation2 + $0x18] sm:$0xff]
        %v989 = vld [vmem:[#allocation2 + $0x20] sm:$0xff]
        %v990 = vld [vmem:[#allocation2 + $0x28] sm:$0xff]
        %v991 = vld [vmem:[#allocation2 + $0x30] sm:$0xff]
        %v992 = vld [vmem:[#allocation2 + $0x38] sm:$0xff]
        %v993 = vld [vmem:[#allocation2 + $0x40] sm:$0xff]
        %v994 = vld [vmem:[#allocation2 + $0x48] sm:$0xff]
        %v995 = vld [vmem:[#allocation2 + $0x50] sm:$0xff]
        %v996 = vld [vmem:[#allocation2 + $0x58] sm:$0xff]
        %v997 = vld [vmem:[#allocation2 + $0x60] sm:$0xf]
        %v998 = vld [vmem:[#allocation2 + $0x68] sm:$0xf]
        %v999 = vld [vmem:[#allocation2 + $0x70] sm:$0xf]
        %vm1000 = vcmask 293888
        %v1002 = vsel %vm1000, %v984, 0
        %v1005 = vsel %vm227, %v997, 0
        %v1008 = vsel %vm227, %v998, 0
        %v1011 = vsel %vm227, %v999, 0
        %1013 = vmatprep.subr.mxu0 %v986
        %1014 = vmatpush1.msra.mxu0 %v985
        %1015 = vmatprep.subr.mxu0 %v989
        %1016 = vmatpush1.msra.mxu0 %v988
        %1017 = vmatprep.subr.mxu0 %v992
        %1018 = vmatpush1.msra.mxu0 %v991
        %1019 = vmatprep.subr.mxu0 %v995
        %1020 = vmatpush1.msra.mxu0 %v994
        %1021 = vmatprep.subr.mxu0 %v1008
        %1022 = vmatpush1.msra.mxu0 %v1005
        %1023 = vmatprep.subr.mxu0 0.0
        %1024 = vmatpush1.msra.mxu0 0.0
        %1025 = vmatprep.subr.mxu0 0.0
        %1026 = vmatpush1.msra.mxu0 0.0
        %1027 = vmatprep.subr.mxu0 0.0
        %1028 = vmatpush1.msra.mxu0 0.0
        %1029 = vmatprep.subr.mxu0 0.0
        %1030 = vmatpush1.msra.mxu0 0.0
        %1031 = vmatprep.subr.mxu0 0.0
        %1032 = vmatpush1.msra.mxu0 0.0
        %1033 = vmatprep.subr.mxu0 0.0
        %1034 = vmatpush1.msra.mxu0 0.0
        %1035 = vmatprep.subr.mxu0 0.0
        %1036 = vmatpush1.msra.mxu0 0.0
        %1037 = vmatprep.subr.mxu0 0.0
        %1038 = vmatpush1.msra.mxu0 0.0
        %1039 = vmatprep.subr.mxu0 0.0
        %1040 = vmatpush1.msra.mxu0 0.0
        %1041 = vmatprep.subr.mxu0 0.0
        %1042 = vmatpush1.msra.mxu0 0.0
        %1043 = vmatprep.subr.mxu0 0.0
        %1044 = vmatpush1.msra.mxu0 0.0
        %1045 = vmatprep.subr.mxu0 0.0
        %1046 = vmatpush1.msra.mxu0 0.0
        %1047 = vmatprep.subr.mxu0 0.0
        %1048 = vmatpush1.msra.mxu0 0.0
        %1049 = vmatprep.subr.mxu0 0.0
        %1050 = vmatpush1.msra.mxu0 0.0
        %1051 = vmatprep.subr.mxu0 0.0
        %1052 = vmatpush1.msra.mxu0 0.0
        %1053 = vmatprep.subr.mxu0 0.0
        %1054 = vmatpush1.msra.mxu0 0.0
        %1055 = vmatprep.subr.mxu0 0.0
        %1056 = vmatpush1.msra.mxu0 0.0
        %1057 = vmatprep.subr.mxu0 0.0
        %1058 = vmatpush1.msra.mxu0 0.0
        %1059 = vmatprep.subr.mxu0 0.0
        %1060 = vmatpush1.msra.mxu0 0.0
        %1061 = vmatprep.subr.mxu0 0.0
        %1062 = vmatpush1.msra.mxu0 0.0
        %1063 = vmatprep.subr.mxu0 0.0
        %1064 = vmatpush1.msra.mxu0 0.0
        %1065 = vmatprep.subr.mxu0 0.0
        %1066 = vmatpush1.msra.mxu0 0.0
        %1067 = vmatprep.subr.mxu0 0.0
        %1068 = vmatpush1.msra.mxu0 0.0
        %1069 = vmatprep.subr.mxu0 0.0
        %1070 = vmatpush1.msra.mxu0 0.0
        %1071 = vmatprep.subr.mxu0 0.0
        %1072 = vmatpush1.msra.mxu0 0.0
        %1073 = vmatprep.subr.mxu0 0.0
        %1074 = vmatpush1.msra.mxu0 0.0
        %1075 = vmatprep.subr.mxu0 0.0
        %1076 = vmatpush1.msra.mxu0 0.0
        %1077 = vmatprep.mubr.f32.mxu0 0.0
        %1078 = vmatmul.mubr.f32.gmra.mrb[0].mxu0 %v1002
        %v1079 = vpop.f32.mrb[0].mxu0
        %v1080 = vadd.f32 0.0, %v1079
        %v1081 = vpop.f32.mrb[0].mxu0
        %v1082 = vadd.f32 0.0, %v1081
        %1083 = vdwg.mxu0
        %1084 = vmatprep.subr.mxu0 0.0
        %1085 = vmatpush1.msra.mxu0 %v987
        %1086 = vmatprep.subr.mxu0 0.0
        %1087 = vmatpush1.msra.mxu0 %v990
        %1088 = vmatprep.subr.mxu0 0.0
        %1089 = vmatpush1.msra.mxu0 %v993
        %1090 = vmatprep.subr.mxu0 0.0
        %1091 = vmatpush1.msra.mxu0 %v996
        %1092 = vmatprep.subr.mxu0 0.0
        %1093 = vmatpush1.msra.mxu0 %v1011
        %1094 = vmatprep.subr.mxu0 0.0
        %1095 = vmatpush1.msra.mxu0 0.0
        %1096 = vmatprep.subr.mxu0 0.0
        %1097 = vmatpush1.msra.mxu0 0.0
        %1098 = vmatprep.subr.mxu0 0.0
        %1099 = vmatpush1.msra.mxu0 0.0
        %1100 = vmatprep.subr.mxu0 0.0
        %1101 = vmatpush1.msra.mxu0 0.0
        %1102 = vmatprep.subr.mxu0 0.0
        %1103 = vmatpush1.msra.mxu0 0.0
        %1104 = vmatprep.subr.mxu0 0.0
        %1105 = vmatpush1.msra.mxu0 0.0
        %1106 = vmatprep.subr.mxu0 0.0
        %1107 = vmatpush1.msra.mxu0 0.0
        %1108 = vmatprep.subr.mxu0 0.0
        %1109 = vmatpush1.msra.mxu0 0.0
        %1110 = vmatprep.subr.mxu0 0.0
        %1111 = vmatpush1.msra.mxu0 0.0
        %1112 = vmatprep.subr.mxu0 0.0
        %1113 = vmatpush1.msra.mxu0 0.0
        %1114 = vmatprep.subr.mxu0 0.0
        %1115 = vmatpush1.msra.mxu0 0.0
        %1116 = vmatprep.subr.mxu0 0.0
        %1117 = vmatpush1.msra.mxu0 0.0
        %1118 = vmatprep.subr.mxu0 0.0
        %1119 = vmatpush1.msra.mxu0 0.0
        %1120 = vmatprep.subr.mxu0 0.0
        %1121 = vmatpush1.msra.mxu0 0.0
        %1122 = vmatprep.subr.mxu0 0.0
        %1123 = vmatpush1.msra.mxu0 0.0
        %1124 = vmatprep.subr.mxu0 0.0
        %1125 = vmatpush1.msra.mxu0 0.0
        %1126 = vmatprep.subr.mxu0 0.0
        %1127 = vmatpush1.msra.mxu0 0.0
        %1128 = vmatprep.subr.mxu0 0.0
        %1129 = vmatpush1.msra.mxu0 0.0
        %1130 = vmatprep.subr.mxu0 0.0
        %1131 = vmatpush1.msra.mxu0 0.0
        %1132 = vmatprep.subr.mxu0 0.0
        %1133 = vmatpush1.msra.mxu0 0.0
        %1134 = vmatprep.subr.mxu0 0.0
        %1135 = vmatpush1.msra.mxu0 0.0
        %1136 = vmatprep.subr.mxu0 0.0
        %1137 = vmatpush1.msra.mxu0 0.0
        %1138 = vmatprep.subr.mxu0 0.0
        %1139 = vmatpush1.msra.mxu0 0.0
        %1140 = vmatprep.subr.mxu0 0.0
        %1141 = vmatpush1.msra.mxu0 0.0
        %1142 = vmatprep.subr.mxu0 0.0
        %1143 = vmatpush1.msra.mxu0 0.0
        %1144 = vmatprep.subr.mxu0 0.0
        %1145 = vmatpush1.msra.mxu0 0.0
        %1146 = vmatprep.subr.mxu0 0.0
        %1147 = vmatpush1.msra.mxu0 0.0
        %1148 = vmatprep.mubr.f32.mxu0 0.0
        %1149 = vmatmul.mubr.f32.gmra.mrb[0].mxu0 %v1002
        %v1150 = vpop.f32.mrb[0].mxu0
        %v1151 = vadd.f32 0.0, %v1150
        %v1152 = vpop.f32.mrb[0].mxu0
        %1153 = vdwg.mxu0
        %1154 = vst [vmem:[%s191] sm:$0xff] %v1080
        %1155 = vst [vmem:[%s191 + $0x8] sm:$0xff] %v1082
        %vm1156 = vcmask 556032
        %1157 = vst.msk [vmem:[%s191 + $0x10] sm:$0xff] %vm1156, %v1151
        %v1158 = vadd.f32 %v1080, %v1082
        %v1159 = vsel %vm1156, %v1151, 0.0
        %v1160 = vadd.f32 %v1158, %v1159
        %1161 = vadd.xlane.f32.xlu0 %v1160
        %v1162 = vpop.xlane.xlu0 %1161
        %vm1163 = vcmask 7168
        %1164 = vst.msk [vmem:[%s212] sm:$0xff] %vm1163, %v1162
        %v1165 = vmul.f32 %v1080, %v1080
        %v1166 = vmul.f32 %v1082, %v1082
        %v1167 = vmul.f32 %v1151, %v1151
        %v1168 = vadd.f32 %v1165, %v1166
        %v1169 = vsel %vm1156, %v1167, 0.0
        %v1170 = vadd.f32 %v1168, %v1169
        %1171 = vadd.xlane.f32.xlu0 %v1170
        %v1172 = vpop.xlane.xlu0 %1171
        %1173 = vst.msk [vmem:[%s216] sm:$0xff] %vm1163, %v1172
        %s1174 = sand.u32 %s74, 1
        %s1175 = scalar_lea.sflag [#allocation4], %s1174
        %s1176 = sand.u32 %s74, 1
        %s1177 = smul.addr %s1176, 24
        %s1178 = scalar_lea.vmem [#allocation3], %s1177
        %p1179 = scmp.lt.s32.totalorder %s19, 1
        %s1180 = scalar_select %p1179, %s19, 1
        %s1181 = smul.addr %s1180, 8
        %s1182 = scalar_lea.vmem %s3, %s1181
        %p1183 = scmp.lt.s32.totalorder %s19, 1
        %s1184 = scalar_select %p1183, %s19, 1
        %s1185 = smul.addr %s1184, 8
        %s1186 = scalar_lea.vmem %s4, %s1185
        // Predicated region
        $region29: #{tpu_custom_call.1} parent=27 // pred_check
          %p1187 = pneg %p84
        $region30: #{tpu_custom_call.1} parent=27 // pred_check_branch
          %1189 = sbr.rel (%p1187) target = $region32
        $region31: #{tpu_custom_call.1} parent=27 // pred_region
          %s1191 = ssub.s32 384, 384
          %1192 = vsyncadd %s1175, %s1191
          %s1193 = smul.addr %s19, 3
          %s1194 = smul.addr %s1193, 128
          %s1195 = scalar_lea.hbm %s2, %s1194
          %s1197 = sshll.u32 %s1178, 4
          %s1198 = int_to_ptr.vmem [resolvable:$true] %s1197
          %1200 = dma.vmem_to_hbm [thread:$0]  %s1198, 384, %s1195, %s1175
        $region32: #{tpu_custom_call.1} parent=27 // pred_fallthru
          _
        // Predicated region
        $region33: #{tpu_custom_call.1} parent=27 // pred_check
          %p1201 = pneg %p110
        $region34: #{tpu_custom_call.1} parent=27 // pred_check_branch
          %1203 = sbr.rel (%p1201) target = $region36
        $region35: #{tpu_custom_call.1} parent=27 // pred_region
          _
        $region36: #{tpu_custom_call.1} parent=27 // pred_fallthru
          _
        // Predicated region
        $region37: #{tpu_custom_call.1} parent=27 // pred_check
          %p1204 = pneg %p136
        $region38: #{tpu_custom_call.1} parent=27 // pred_check_branch
          %1206 = sbr.rel (%p1204) target = $region40
        $region39: #{tpu_custom_call.1} parent=27 // pred_region
          _
        $region40: #{tpu_custom_call.1} parent=27 // pred_fallthru
          _
      $region28: #{tpu_custom_call.1} parent=5 // pred_fallthru
        _
      %p1207 = scmp.le.s32.totalorder 2, %s14
      // Predicated region
      $region41: #{tpu_custom_call.1} parent=5 // pred_check
        %p1208 = pneg %p1207
      $region42: #{tpu_custom_call.1} parent=5 // pred_check_branch
        %1210 = sbr.rel (%p1208) target = $region44
      $region43: #{tpu_custom_call.1} parent=5 // pred_region
        %s1211 = ssub.s32 %s14, 2
        // Predicated region
        $region45: #{tpu_custom_call.1} parent=43 // pred_check
          %p1212 = pneg %p90
        $region46: #{tpu_custom_call.1} parent=43 // pred_check_branch
          %1214 = sbr.rel (%p1212) target = $region48
        $region47: #{tpu_custom_call.1} parent=43 // pred_region
          %s1215 = sand.u32 %s75, 1
          %s1216 = scalar_lea.sflag [#allocation4], %s1215
          %s1217 = sand.u32 %s75, 1
          %s1218 = smul.addr %s1217, 24
          %s1219 = scalar_lea.vmem [#allocation3], %s1218
          %1220 = dma.done %s1216, 384
        $region48: #{tpu_custom_call.1} parent=43 // pred_fallthru
          _
        // Predicated region
        $region49: #{tpu_custom_call.1} parent=43 // pred_check
          %p1221 = pneg %p116
        $region50: #{tpu_custom_call.1} parent=43 // pred_check_branch
          %1223 = sbr.rel (%p1221) target = $region52
        $region51: #{tpu_custom_call.1} parent=43 // pred_region
          %p1224 = scmp.lt.s32.totalorder %s20, 1
          %s1225 = scalar_select %p1224, %s20, 1
          %s1226 = smul.addr %s1225, 8
          %s1227 = scalar_lea.vmem %s3, %s1226
        $region52: #{tpu_custom_call.1} parent=43 // pred_fallthru
          _
        // Predicated region
        $region53: #{tpu_custom_call.1} parent=43 // pred_check
          %p1228 = pneg %p142
        $region54: #{tpu_custom_call.1} parent=43 // pred_check_branch
          %1230 = sbr.rel (%p1228) target = $region56
        $region55: #{tpu_custom_call.1} parent=43 // pred_region
          %p1231 = scmp.lt.s32.totalorder %s20, 1
          %s1232 = scalar_select %p1231, %s20, 1
          %s1233 = smul.addr %s1232, 8
          %s1234 = scalar_lea.vmem %s4, %s1233
        $region56: #{tpu_custom_call.1} parent=43 // pred_fallthru
          _
      $region44: #{tpu_custom_call.1} parent=5 // pred_fallthru
        _
    $region6: #{tpu_custom_call.1} parent=1 // loop_footer
      %s18 = sadd.s32 1, %s14
    $region7: #{tpu_custom_call.1} parent=1 // loop_footer_branch
      %13 = sbr.rel target = $region3
    $region8: #{tpu_custom_call.1} parent=1 // loop_exit
      _
    %1235 = vsyncpa [#allocation4], 1
    %s1236 = scalar_lea.sflag [#allocation4], 1
    %1237 = vsyncpa %s1236, 1

</llo_original>
